<compile_context>
chip_gen: v6e
topology: v6e:2x2x1
jax: 0.10.0
libtpu: 0.0.40
codegen_flags: <defaults>
</compile_context>

<pallas_src>
import functools

import jax
import jax.numpy as jnp
from jax.experimental import pallas as pl
from jax.experimental.pallas import tpu as pltpu

BN_EPS = 1e-5   # nn.BatchNorm1d default eps
PACK = 8        # batch rows packed into the lane dimension in the apply pass

# Batch-tile sizing.  Per-row VMEM cost of the apply pass is roughly:
#   x tile: 8*d_in*4 B / 8 rows = 128 B/row/buffer (double-buffered),
#   out tile: 8*d2*4 / 8 = 64 B/row/buffer (lane-dense, so no 8x padding),
#   f32 intermediates (h0/a0/h1/a1/out) ~ 1 KiB/row live in VMEM,
# so a 1024-row tile is ~2-3 MiB -- comfortably inside the *default scoped*
# VMEM on every generation (v5e 16 MiB, v6e/v7x 32 MiB).  Tiles >= ~512-1024
# rows already amortize the per-step overhead, so bigger tiles only add VMEM
# pressure (worst on v5e / v7x); hence the 1024 cap.
MAX_BLOCK_BATCH = 1024
MIN_BLOCK_BATCH = 64     # tb // PACK >= 8 sublanes for the lane-packed tile


def _round_up(x, m):
    return -(-x // m) * m


def _choose_tiling(batch, block_batch=None):
    """Return (padded_batch, block_batch).

    block_batch is a multiple of 64 (so the lane-packed apply tile keeps >= 8
    sublanes), capped at MAX_BLOCK_BATCH, and -- whenever the batch allows --
    chosen so the grid has at least 2 tiles (lets the "parallel" grid span both
    v7x TensorCores; single-TC v5e/v6e are unaffected).  Ragged batches are
    padded up to a multiple of block_batch instead of falling back to one huge
    full-batch tile."""
    if block_batch is not None:
        if block_batch % MIN_BLOCK_BATCH:
            raise ValueError(f"block_batch must be a multiple of {MIN_BLOCK_BATCH}")
        return _round_up(batch, block_batch), block_batch
    padded = _round_up(batch, MIN_BLOCK_BATCH)
    candidates = [tb for tb in range(MIN_BLOCK_BATCH, MAX_BLOCK_BATCH + 1,
                                     MIN_BLOCK_BATCH) if padded % tb == 0]
    multi = [tb for tb in candidates if padded // tb >= 2]
    tb = max(multi) if multi else max(candidates)
    return padded, tb


def _block_diag(w, n=PACK):
    """(din, dout) -> (n*din, n*dout) with n copies of w on the diagonal."""
    eye = jnp.eye(n, dtype=w.dtype)
    return jnp.einsum("ij,kl->ikjl", eye, w).reshape(n * w.shape[0],
                                                     n * w.shape[1])


def _pack_rows(rows, width, n_rows=8):
    """Stack 1-D vectors into one (n_rows, width) f32 operand (zero-padded).
    One packed operand instead of several tiny (1, d) ones: each would
    otherwise pad to its own (8, 128) VMEM tile + DMA descriptor."""
    out = []
    for v in rows:
        v = v.astype(jnp.float32)
        out.append(jnp.zeros((width,), jnp.float32).at[: v.shape[0]].set(v))
    while len(out) < n_rows:
        out.append(jnp.zeros((width,), jnp.float32))
    return jnp.stack(out)


# --------------------------------------------------------------------------
# Kernels
# --------------------------------------------------------------------------

def _stats0_kernel(x_ref, w0_ref, p_ref, *, compute_dtype):
    """Per-tile partial sums for layer-0 BN statistics (training mode).

    grid = (n_tiles,), fully parallel: each tile writes its own (2, d0) output
    block (row 0 = sum(h0), row 1 = sum(h0^2)); the wrapper sums the partials.
    Pre-BN bias b0 is omitted -- it cancels under batch-mean subtraction.
    Zero-padded batch rows contribute exactly zero, so no masking needed here.
    """
    h0 = jnp.dot(x_ref[...].astype(compute_dtype), w0_ref[...],
                 preferred_element_type=jnp.float32)
    p_ref[0:1, :] = jnp.sum(h0, axis=0, keepdims=True)
    p_ref[1:2, :] = jnp.sum(h0 * h0, axis=0, keepdims=True)


def _stats1_kernel(x_ref, w0_ref, w1_ref, bn0_ref, p_ref, *,
                   n_real, block_batch, mask_rows, compute_dtype):
    """Per-tile partial sums for layer-1 BN statistics (training mode).

    bn0_ref is the packed (8, d0) per-feature operand: row 0 = scale0,
    row 1 = shift0 (layer-0 BN already folded to an affine by the wrapper).
    Padded rows must be zeroed before the layer-1 matmul because
    relu(shift0) != 0 in general."""
    h0 = jnp.dot(x_ref[...].astype(compute_dtype), w0_ref[...],
                 preferred_element_type=jnp.float32)
    a0 = jnp.maximum(h0 * bn0_ref[0:1, :] + bn0_ref[1:2, :], 0.0)
    if mask_rows:
        row = (jax.lax.broadcasted_iota(jnp.int32, a0.shape, 0)
               + pl.program_id(0) * block_batch)
        a0 = jnp.where(row < n_real, a0, 0.0)
    h1 = jnp.dot(a0.astype(compute_dtype), w1_ref[...],
                 preferred_element_type=jnp.float32)
    p_ref[0:1, :] = jnp.sum(h1, axis=0, keepdims=True)
    p_ref[1:2, :] = jnp.sum(h1 * h1, axis=0, keepdims=True)


def _apply_kernel(xp_ref, w0_ref, w1_ref, w2_ref, aff_ref, o_ref, *,
                  lane_widths, compute_dtype, apply_sigmoid):
    """Fused Linear->BN->ReLU->Linear->BN->ReLU->Linear(+bias[+sigmoid]) on a
    lane-packed batch tile.

    Lane-dense layout: the wrapper reshapes x from (B, d_in) to (B/8, 8*d_in)
    (free row-major reshape) and every linear layer uses an 8-way
    block-diagonal weight, so intermediates / output occupy full 128-lane
    multiples (x: 256, h0: 512, h1: 256, out: 128 lanes).  Stores are
    full-width, the output pipeline buffer is 8x smaller, and BN/ReLU runs at
    full VPU lane occupancy.  BN + final bias are pre-folded into per-feature
    rows of aff_ref (8, 8*d0):
      row 0/1: scale0/shift0 (8*d0 lanes); row 2/3: scale1/shift1 (first 8*d1);
      row 4:   final-layer bias b2 (first 8*d2)."""
    w1w, w2w = lane_widths
    h0 = jnp.dot(xp_ref[...].astype(compute_dtype), w0_ref[...],
                 preferred_element_type=jnp.float32)
    a0 = jnp.maximum(h0 * aff_ref[0:1, :] + aff_ref[1:2, :], 0.0)
    h1 = jnp.dot(a0.astype(compute_dtype), w1_ref[...],
                 preferred_element_type=jnp.float32)
    a1 = jnp.maximum(h1 * aff_ref[2:3, :w1w] + aff_ref[3:4, :w1w], 0.0)
    out = jnp.dot(a1.astype(compute_dtype), w2_ref[...],
                  preferred_element_type=jnp.float32) + aff_ref[4:5, :w2w]
    if apply_sigmoid:
        out = jax.nn.sigmoid(out)
    o_ref[...] = out


# --------------------------------------------------------------------------
# Parameters / wrapper
# --------------------------------------------------------------------------

def init_params(key, input_size, hidden_size):
    """Parameters matching the PyTorch module at init: xavier_normal_ Linear
    weights (gain=1; stored transposed to (in, out)), zero Linear biases,
    BatchNorm1d gamma=1 / beta=0 / running_mean=0 / running_var=1."""
    dims = [input_size] + list(hidden_size)
    keys = jax.random.split(key, len(hidden_size))
    weights, biases = [], []
    for i, (din, dout) in enumerate(zip(dims[:-1], dims[1:])):
        std = (2.0 / (din + dout)) ** 0.5
        w_pt = std * jax.random.normal(keys[i], (dout, din), jnp.float32)
        weights.append(w_pt.T)                                   # (in, out)
        biases.append(jnp.zeros((dout,), jnp.float32))
    bn_dims = hidden_size[:-1]
    return dict(
        weights=weights,
        biases=biases,
        gammas=[jnp.ones((d,), jnp.float32) for d in bn_dims],
        betas=[jnp.zeros((d,), jnp.float32) for d in bn_dims],
        running_means=[jnp.zeros((d,), jnp.float32) for d in bn_dims],
        running_vars=[jnp.ones((d,), jnp.float32) for d in bn_dims],
    )


def fully_connected_layer(x, params, *, sigmoid=False, training=True,
                          block_batch=None, matmul_dtype=jnp.bfloat16):
    """Forward pass of FullyConnectedLayer(32, [64, 32, 16], bias=[T,T,T],
    batch_norm=True, activation='relu', sigmoid=sigmoid)."""
    w0, w1, w2 = params["weights"]
    b0, b1, b2 = params["biases"]
    g0, g1 = params["gammas"]
    be0, be1 = params["betas"]
    rm0, rm1 = params["running_means"]
    rv0, rv1 = params["running_vars"]

    batch, d_in = x.shape
    d0, d1, d2 = w0.shape[1], w1.shape[1], w2.shape[1]

    padded, tb = _choose_tiling(batch, block_batch)
    n_tiles = padded // tb
    x_pad = x if padded == batch else jnp.pad(x, ((0, padded - batch), (0, 0)))

    # Weights are tiny -> cast once here; x is cast *inside* the kernels
    # (avoids a separate un-hidden XLA cast pass over x in HBM).
    w0c, w1c, w2c = (w.astype(matmul_dtype) for w in (w0, w1, w2))
    itemsize = jnp.dtype(matmul_dtype).itemsize
    par = pltpu.CompilerParams(dimension_semantics=("parallel",))

    if training:
        # ---- pass 1: per-tile partial sums for layer-0 BN (parallel grid) ----
        partial0 = pl.pallas_call(
            functools.partial(_stats0_kernel, compute_dtype=matmul_dtype),
            out_shape=jax.ShapeDtypeStruct((n_tiles, 2, d0), jnp.float32),
            grid_spec=pltpu.PrefetchScalarGridSpec(
                num_scalar_prefetch=0, grid=(n_tiles,),
                in_specs=[pl.BlockSpec((tb, d_in), lambda i: (i, 0)),   # x streamed
                          pl.BlockSpec((d_in, d0), lambda i: (0, 0))],  # W0 resident
                out_specs=pl.BlockSpec((None, 2, d0), lambda i: (i, 0, 0)),
            ),
            compiler_params=par,
            cost_estimate=pl.CostEstimate(
                flops=int(2 * padded * d_in * d0), transcendentals=0,
                bytes_accessed=int(padded * d_in * 4 + d_in * d0 * itemsize
                                   + n_tiles * 2 * d0 * 4)),
        )(x_pad, w0c)
        stats0 = jnp.sum(partial0, axis=0)                       # (2, d0)
        mean0 = stats0[0] / batch
        var0 = stats0[1] / batch - mean0 * mean0                 # biased (BN training)
        scale0 = g0 * jax.lax.rsqrt(var0 + BN_EPS)
        shift0 = be0 - mean0 * scale0                            # b0 cancels under BN
        bn0 = _pack_rows([scale0, shift0], d0)                   # (8, d0)

        # ---- pass 2: per-tile partial sums for layer-1 BN (parallel grid) ----
        partial1 = pl.pallas_call(
            functools.partial(_stats1_kernel, n_real=batch, block_batch=tb,
                              mask_rows=(padded != batch),
                              compute_dtype=matmul_dtype),
            out_shape=jax.ShapeDtypeStruct((n_tiles, 2, d1), jnp.float32),
            grid_spec=pltpu.PrefetchScalarGridSpec(
                num_scalar_prefetch=0, grid=(n_tiles,),
                in_specs=[pl.BlockSpec((tb, d_in), lambda i: (i, 0)),
                          pl.BlockSpec((d_in, d0), lambda i: (0, 0)),
                          pl.BlockSpec((d0, d1), lambda i: (0, 0)),
                          pl.BlockSpec((8, d0), lambda i: (0, 0))],
                out_specs=pl.BlockSpec((None, 2, d1), lambda i: (i, 0, 0)),
            ),
            compiler_params=par,
            cost_estimate=pl.CostEstimate(
                flops=int(2 * padded * (d_in * d0 + d0 * d1)), transcendentals=0,
                bytes_accessed=int(padded * d_in * 4
                                   + (d_in * d0 + d0 * d1) * itemsize
                                   + n_tiles * 2 * d1 * 4)),
        )(x_pad, w0c, w1c, bn0)
        stats1 = jnp.sum(partial1, axis=0)
        mean1 = stats1[0] / batch
        var1 = stats1[1] / batch - mean1 * mean1
        scale1 = g1 * jax.lax.rsqrt(var1 + BN_EPS)
        shift1 = be1 - mean1 * scale1                            # b1 cancels
    else:
        # eval-mode BN: running statistics; Linear biases fold into the shift.
        scale0 = g0 * jax.lax.rsqrt(rv0 + BN_EPS)
        shift0 = be0 + (b0 - rm0) * scale0
        scale1 = g1 * jax.lax.rsqrt(rv1 + BN_EPS)
        shift1 = be1 + (b1 - rm1) * scale1

    # ---- apply pass: lane-packed fused MLP, batch tiles independent ----
    tb8 = tb // PACK
    xp = x_pad.reshape(padded // PACK, PACK * d_in)              # free reshape
    w0bd, w1bd, w2bd = _block_diag(w0c), _block_diag(w1c), _block_diag(w2c)
    aff = _pack_rows([jnp.tile(scale0, PACK), jnp.tile(shift0, PACK),
                      jnp.tile(scale1, PACK), jnp.tile(shift1, PACK),
                      jnp.tile(b2.astype(jnp.float32), PACK)], PACK * d0)

    out_packed = pl.pallas_call(
        functools.partial(_apply_kernel, lane_widths=(PACK * d1, PACK * d2),
                          compute_dtype=matmul_dtype, apply_sigmoid=sigmoid),
        out_shape=jax.ShapeDtypeStruct((padded // PACK, PACK * d2), jnp.float32),
        grid_spec=pltpu.PrefetchScalarGridSpec(
            num_scalar_prefetch=0, grid=(n_tiles,),
            in_specs=[
                pl.BlockSpec((tb8, PACK * d_in), lambda i: (i, 0)),   # x streamed
                pl.BlockSpec((PACK * d_in, PACK * d0), lambda i: (0, 0)),
                pl.BlockSpec((PACK * d0, PACK * d1), lambda i: (0, 0)),
                pl.BlockSpec((PACK * d1, PACK * d2), lambda i: (0, 0)),
                pl.BlockSpec((8, PACK * d0), lambda i: (0, 0)),       # scale/shift/bias
            ],
            out_specs=pl.BlockSpec((tb8, PACK * d2), lambda i: (i, 0)),
        ),
        compiler_params=par,   # independent tiles -> spans both v7x TCs
        cost_estimate=pl.CostEstimate(
            flops=int(2 * padded * PACK * (d_in * d0 + d0 * d1 + d1 * d2)),
            transcendentals=int(padded * d2) if sigmoid else 0,
            bytes_accessed=int(padded * d_in * 4 + padded * d2 * 4
                               + PACK * PACK * (d_in * d0 + d0 * d1 + d1 * d2)
                               * itemsize + 8 * PACK * d0 * 4)),
    )(xp, w0bd, w1bd, w2bd, aff)

    out = out_packed.reshape(padded, d2)       # free row-major un-pack
    return out if padded == batch else out[:batch]


# --------------------------------------------------------------------------
# Pure-JAX reference
# --------------------------------------------------------------------------

def _reference(x, params, *, sigmoid=False, training=True,
               matmul_dtype=jnp.float32):
    """Module-faithful forward (eval-mode dropout). `matmul_dtype` mirrors the
    kernel's MXU feed precision when set to bfloat16."""
    w0, w1, w2 = params["weights"]
    b0, b1, b2 = params["biases"]
    g0, g1 = params["gammas"]
    be0, be1 = params["betas"]
    rm0, rm1 = params["running_means"]
    rv0, rv1 = params["running_vars"]

    def dot(a, b):
        return jnp.dot(a.astype(matmul_dtype), b.astype(matmul_dtype),
                       preferred_element_type=jnp.float32,
                       precision=jax.lax.Precision.HIGHEST)

    def bn_relu(h, g, be, rm, rv):
        if training:
            m = jnp.mean(h, axis=0, keepdims=True)
            v = jnp.mean((h - m) ** 2, axis=0, keepdims=True)   # biased variance
        else:
            m, v = rm[None, :], rv[None, :]
        return jnp.maximum(g * (h - m) * jax.lax.rsqrt(v + BN_EPS) + be, 0.0)

    h = dot(x, w0) + b0
    h = bn_relu(h, g0, be0, rm0, rv0)
    h = dot(h, w1) + b1
    h = bn_relu(h, g1, be1, rm1, rv1)
    h = dot(h, w2) + b2
    return jax.nn.sigmoid(h) if sigmoid else h


if __name__ == "__main__":
    key = jax.random.PRNGKey(0)
    k_x, k_p, k_b, k_g, k_be, k_rm, k_rv = jax.random.split(key, 7)

    input_size = 32
    hidden_size = [64, 32, 16]
    batch = 256

    x = jax.random.normal(k_x, (batch, input_size), jnp.float32)
    params = init_params(k_p, input_size, hidden_size)
    # Perturb away from the (zero-bias, identity-BN) init so the bias /
    # gamma/beta / running-stat folding paths are actually exercised.
    params["biases"] = [0.1 * jax.random.normal(jax.random.fold_in(k_b, i), b.shape)
                        for i, b in enumerate(params["biases"])]
    params["gammas"] = [1.0 + 0.1 * jax.random.normal(jax.random.fold_in(k_g, i), g.shape)
                        for i, g in enumerate(params["gammas"])]
    params["betas"] = [0.1 * jax.random.normal(jax.random.fold_in(k_be, i), b.shape)
                       for i, b in enumerate(params["betas"])]
    params["running_means"] = [0.1 * jax.random.normal(jax.random.fold_in(k_rm, i), m.shape)
                               for i, m in enumerate(params["running_means"])]
    params["running_vars"] = [1.0 + 0.5 * jax.random.uniform(jax.random.fold_in(k_rv, i), v.shape)
                              for i, v in enumerate(params["running_vars"])]

    # Training-mode forward (module default): batch-statistics BN.
    fc_train = jax.jit(fully_connected_layer)
    out = jax.block_until_ready(fc_train(x, params))
    assert out.shape == (batch, hidden_size[-1])

    # Tight check vs. a JAX reference using the same bf16 matmul feeds.
    ref_bf16 = _reference(x, params, matmul_dtype=jnp.bfloat16)
    assert jnp.allclose(out, ref_bf16, atol=5e-3, rtol=5e-3), "mismatch (bf16 recipe)"
    # Loose check vs. the full-f32 module-faithful reference.
    ref_f32 = _reference(x, params, matmul_dtype=jnp.float32)
    assert jnp.allclose(out, ref_f32, atol=1e-1, rtol=1e-1), "mismatch (f32 module ref)"

    # Eval-mode forward (running-stat BN; single pallas_call).
    fc_eval = jax.jit(functools.partial(fully_connected_layer, training=False))
    out_eval = jax.block_until_ready(fc_eval(x, params))
    ref_eval = _reference(x, params, training=False, matmul_dtype=jnp.bfloat16)
    assert out_eval.shape == (batch, hidden_size[-1])
    assert jnp.allclose(out_eval, ref_eval, atol=5e-3, rtol=5e-3), "mismatch (eval)"

    # Ragged batch: exercises padding + padded-row masking in the stats pass.
    xr = x[:200]
    out_r = jax.block_until_ready(jax.jit(fully_connected_layer)(xr, params))
    ref_r = _reference(xr, params, matmul_dtype=jnp.bfloat16)
    assert out_r.shape == (200, hidden_size[-1])
    assert jnp.allclose(out_r, ref_r, atol=5e-3, rtol=5e-3), "mismatch (ragged)"

    print("KERNEL_OK")
</pallas_src>

<mosaic_0001>
module attributes {stable_mosaic.version = 11 : i64} {
  func.func @_stats0_kernel(%arg0: i32, %arg1: memref<128x32xf32, #tpu.memory_space<vmem>>, %arg2: memref<32x64xbf16, #tpu.memory_space<vmem>>, %arg3: memref<1x2x64xf32, #tpu.memory_space<vmem>>) attributes {dimension_semantics = [#tpu.dimension_semantics<parallel>], iteration_bounds = array<i64: 2>, scalar_prefetch = 0 : i64, scratch_operands = 0 : i64, tpu.core_type = #tpu.core_type<tc>, window_params = [{transform_indices = @transform_0, window_bounds = array<i64: 128, 32>}, {pipeline_mode = #tpu.pipeline_mode<synchronous>, transform_indices = @transform_1, window_bounds = array<i64: 32, 64>}, {transform_indices = @transform_2, window_bounds = array<i64: 1, 2, 64>}]} {
    %c0 = arith.constant 0 : index
    %c0_0 = arith.constant 0 : index
    %0 = vector.load %arg1[%c0, %c0_0] : memref<128x32xf32, #tpu.memory_space<vmem>>, vector<128x32xf32>
    %1 = arith.truncf %0 : vector<128x32xf32> to vector<128x32xbf16>
    %c0_1 = arith.constant 0 : index
    %c0_2 = arith.constant 0 : index
    %2 = vector.load %arg2[%c0_1, %c0_2] : memref<32x64xbf16, #tpu.memory_space<vmem>>, vector<32x64xbf16>
    %cst = arith.constant dense<0.000000e+00> : vector<128x64xf32>
    %3 = tpu.matmul %1, %2, %cst {dimension_numbers = #tpu.dot_dimension_numbers<[1], [0], [0], [1], [0, 0, 1, 1], [], []>} : vector<128x32xbf16>, vector<32x64xbf16>, vector<128x64xf32> -> vector<128x64xf32>
    %cst_3 = arith.constant dense<0.000000e+00> : vector<64xf32>
    %4 = vector.multi_reduction <add>, %3, %cst_3 [0] : vector<128x64xf32> to vector<64xf32>
    %5 = vector.shape_cast %4 : vector<64xf32> to vector<1x64xf32>
    %c0_4 = arith.constant 0 : index
    %c0_5 = arith.constant 0 : index
    %c0_6 = arith.constant 0 : index
    %6 = vector.load %arg3[%c0_4, %c0_5, %c0_6] : memref<1x2x64xf32, #tpu.memory_space<vmem>>, vector<1x1x64xf32>
    %7 = vector.shape_cast %6 : vector<1x1x64xf32> to vector<1x64xf32>
    %8 = vector.shape_cast %5 : vector<1x64xf32> to vector<1x1x64xf32>
    tpu.vector_store %arg3[%c0_4, %c0_5, %c0_6], %8 {strides = array<i32>} : memref<1x2x64xf32, #tpu.memory_space<vmem>>, vector<1x1x64xf32>,
    %9 = arith.mulf %3, %3 : vector<128x64xf32>
    %cst_7 = arith.constant dense<0.000000e+00> : vector<64xf32>
    %10 = vector.multi_reduction <add>, %9, %cst_7 [0] : vector<128x64xf32> to vector<64xf32>
    %11 = vector.shape_cast %10 : vector<64xf32> to vector<1x64xf32>
    %c0_8 = arith.constant 0 : index
    %c1 = arith.constant 1 : index
    %c0_9 = arith.constant 0 : index
    %12 = vector.load %arg3[%c0_8, %c1, %c0_9] : memref<1x2x64xf32, #tpu.memory_space<vmem>>, vector<1x1x64xf32>
    %13 = vector.shape_cast %12 : vector<1x1x64xf32> to vector<1x64xf32>
    %14 = vector.shape_cast %11 : vector<1x64xf32> to vector<1x1x64xf32>
    tpu.vector_store %arg3[%c0_8, %c1, %c0_9], %14 {strides = array<i32>} : memref<1x2x64xf32, #tpu.memory_space<vmem>>, vector<1x1x64xf32>,
    return
  }
  func.func @transform_0(%arg0: i32) -> (i32, i32) {
    %c0_i32 = arith.constant 0 : i32
    %c0_i32_0 = arith.constant 0 : i32
    return %arg0, %c0_i32 : i32, i32
  }
  func.func @transform_1(%arg0: i32) -> (i32, i32) {
    %c0_i32 = arith.constant 0 : i32
    %c0_i32_0 = arith.constant 0 : i32
    %c0_i32_1 = arith.constant 0 : i32
    return %c0_i32, %c0_i32_0 : i32, i32
  }
  func.func @transform_2(%arg0: i32) -> (i32, i32, i32) {
    %c0_i32 = arith.constant 0 : i32
    %c0_i32_0 = arith.constant 0 : i32
    %c0_i32_1 = arith.constant 0 : i32
    return %arg0, %c0_i32, %c0_i32_0 : i32, i32, i32
  }
}

module attributes {stable_mosaic.version = 11 : i64} {
  func.func @_stats1_kernel(%arg0: i32, %arg1: memref<128x32xf32, #tpu.memory_space<vmem>>, %arg2: memref<32x64xbf16, #tpu.memory_space<vmem>>, %arg3: memref<64x32xbf16, #tpu.memory_space<vmem>>, %arg4: memref<8x64xf32, #tpu.memory_space<vmem>>, %arg5: memref<1x2x32xf32, #tpu.memory_space<vmem>>) attributes {dimension_semantics = [#tpu.dimension_semantics<parallel>], iteration_bounds = array<i64: 2>, scalar_prefetch = 0 : i64, scratch_operands = 0 : i64, tpu.core_type = #tpu.core_type<tc>, window_params = [{transform_indices = @transform_0, window_bounds = array<i64: 128, 32>}, {pipeline_mode = #tpu.pipeline_mode<synchronous>, transform_indices = @transform_1, window_bounds = array<i64: 32, 64>}, {pipeline_mode = #tpu.pipeline_mode<synchronous>, transform_indices = @transform_2, window_bounds = array<i64: 64, 32>}, {pipeline_mode = #tpu.pipeline_mode<synchronous>, transform_indices = @transform_3, window_bounds = array<i64: 8, 64>}, {transform_indices = @transform_4, window_bounds = array<i64: 1, 2, 32>}]} {
    %c0 = arith.constant 0 : index
    %c0_0 = arith.constant 0 : index
    %0 = vector.load %arg1[%c0, %c0_0] : memref<128x32xf32, #tpu.memory_space<vmem>>, vector<128x32xf32>
    %1 = arith.truncf %0 : vector<128x32xf32> to vector<128x32xbf16>
    %c0_1 = arith.constant 0 : index
    %c0_2 = arith.constant 0 : index
    %2 = vector.load %arg2[%c0_1, %c0_2] : memref<32x64xbf16, #tpu.memory_space<vmem>>, vector<32x64xbf16>
    %cst = arith.constant dense<0.000000e+00> : vector<128x64xf32>
    %3 = tpu.matmul %1, %2, %cst {dimension_numbers = #tpu.dot_dimension_numbers<[1], [0], [0], [1], [0, 0, 1, 1], [], []>} : vector<128x32xbf16>, vector<32x64xbf16>, vector<128x64xf32> -> vector<128x64xf32>
    %c0_3 = arith.constant 0 : index
    %c0_4 = arith.constant 0 : index
    %4 = vector.load %arg4[%c0_3, %c0_4] : memref<8x64xf32, #tpu.memory_space<vmem>>, vector<1x64xf32>
    %5 = vector.broadcast %4 : vector<1x64xf32> to vector<128x64xf32>
    %6 = arith.mulf %3, %5 : vector<128x64xf32>
    %c1 = arith.constant 1 : index
    %c0_5 = arith.constant 0 : index
    %7 = vector.load %arg4[%c1, %c0_5] : memref<8x64xf32, #tpu.memory_space<vmem>>, vector<1x64xf32>
    %8 = vector.broadcast %7 : vector<1x64xf32> to vector<128x64xf32>
    %9 = arith.addf %6, %8 : vector<128x64xf32>
    %cst_6 = arith.constant 0.000000e+00 : f32
    %10 = vector.broadcast %cst_6 : f32 to vector<128x64xf32>
    %11 = arith.maximumf %9, %10 : vector<128x64xf32>
    %12 = arith.truncf %11 : vector<128x64xf32> to vector<128x64xbf16>
    %c0_7 = arith.constant 0 : index
    %c0_8 = arith.constant 0 : index
    %13 = vector.load %arg3[%c0_7, %c0_8] : memref<64x32xbf16, #tpu.memory_space<vmem>>, vector<64x32xbf16>
    %cst_9 = arith.constant dense<0.000000e+00> : vector<128x32xf32>
    %14 = tpu.matmul %12, %13, %cst_9 {dimension_numbers = #tpu.dot_dimension_numbers<[1], [0], [0], [1], [0, 0, 1, 1], [], []>} : vector<128x64xbf16>, vector<64x32xbf16>, vector<128x32xf32> -> vector<128x32xf32>
    %cst_10 = arith.constant dense<0.000000e+00> : vector<32xf32>
    %15 = vector.multi_reduction <add>, %14, %cst_10 [0] : vector<128x32xf32> to vector<32xf32>
    %16 = vector.shape_cast %15 : vector<32xf32> to vector<1x32xf32>
    %c0_11 = arith.constant 0 : index
    %c0_12 = arith.constant 0 : index
    %c0_13 = arith.constant 0 : index
    %17 = vector.load %arg5[%c0_11, %c0_12, %c0_13] : memref<1x2x32xf32, #tpu.memory_space<vmem>>, vector<1x1x32xf32>
    %18 = vector.shape_cast %17 : vector<1x1x32xf32> to vector<1x32xf32>
    %19 = vector.shape_cast %16 : vector<1x32xf32> to vector<1x1x32xf32>
    tpu.vector_store %arg5[%c0_11, %c0_12, %c0_13], %19 {strides = array<i32>} : memref<1x2x32xf32, #tpu.memory_space<vmem>>, vector<1x1x32xf32>,
    %20 = arith.mulf %14, %14 : vector<128x32xf32>
    %cst_14 = arith.constant dense<0.000000e+00> : vector<32xf32>
    %21 = vector.multi_reduction <add>, %20, %cst_14 [0] : vector<128x32xf32> to vector<32xf32>
    %22 = vector.shape_cast %21 : vector<32xf32> to vector<1x32xf32>
    %c0_15 = arith.constant 0 : index
    %c1_16 = arith.constant 1 : index
    %c0_17 = arith.constant 0 : index
    %23 = vector.load %arg5[%c0_15, %c1_16, %c0_17] : memref<1x2x32xf32, #tpu.memory_space<vmem>>, vector<1x1x32xf32>
    %24 = vector.shape_cast %23 : vector<1x1x32xf32> to vector<1x32xf32>
    %25 = vector.shape_cast %22 : vector<1x32xf32> to vector<1x1x32xf32>
    tpu.vector_store %arg5[%c0_15, %c1_16, %c0_17], %25 {strides = array<i32>} : memref<1x2x32xf32, #tpu.memory_space<vmem>>, vector<1x1x32xf32>,
    return
  }
  func.func @transform_0(%arg0: i32) -> (i32, i32) {
    %c0_i32 = arith.constant 0 : i32
    %c0_i32_0 = arith.constant 0 : i32
    return %arg0, %c0_i32 : i32, i32
  }
  func.func @transform_1(%arg0: i32) -> (i32, i32) {
    %c0_i32 = arith.constant 0 : i32
    %c0_i32_0 = arith.constant 0 : i32
    %c0_i32_1 = arith.constant 0 : i32
    return %c0_i32, %c0_i32_0 : i32, i32
  }
  func.func @transform_2(%arg0: i32) -> (i32, i32) {
    %c0_i32 = arith.constant 0 : i32
    %c0_i32_0 = arith.constant 0 : i32
    %c0_i32_1 = arith.constant 0 : i32
    return %c0_i32, %c0_i32_0 : i32, i32
  }
  func.func @transform_3(%arg0: i32) -> (i32, i32) {
    %c0_i32 = arith.constant 0 : i32
    %c0_i32_0 = arith.constant 0 : i32
    %c0_i32_1 = arith.constant 0 : i32
    return %c0_i32, %c0_i32_0 : i32, i32
  }
  func.func @transform_4(%arg0: i32) -> (i32, i32, i32) {
    %c0_i32 = arith.constant 0 : i32
    %c0_i32_0 = arith.constant 0 : i32
    %c0_i32_1 = arith.constant 0 : i32
    return %arg0, %c0_i32, %c0_i32_0 : i32, i32, i32
  }
}

module attributes {stable_mosaic.version = 11 : i64} {
  func.func @_apply_kernel(%arg0: i32, %arg1: memref<16x256xf32, #tpu.memory_space<vmem>>, %arg2: memref<256x512xbf16, #tpu.memory_space<vmem>>, %arg3: memref<512x256xbf16, #tpu.memory_space<vmem>>, %arg4: memref<256x128xbf16, #tpu.memory_space<vmem>>, %arg5: memref<8x512xf32, #tpu.memory_space<vmem>>, %arg6: memref<16x128xf32, #tpu.memory_space<vmem>>) attributes {dimension_semantics = [#tpu.dimension_semantics<parallel>], iteration_bounds = array<i64: 2>, scalar_prefetch = 0 : i64, scratch_operands = 0 : i64, tpu.core_type = #tpu.core_type<tc>, window_params = [{transform_indices = @transform_0, window_bounds = array<i64: 16, 256>}, {pipeline_mode = #tpu.pipeline_mode<synchronous>, transform_indices = @transform_1, window_bounds = array<i64: 256, 512>}, {pipeline_mode = #tpu.pipeline_mode<synchronous>, transform_indices = @transform_2, window_bounds = array<i64: 512, 256>}, {pipeline_mode = #tpu.pipeline_mode<synchronous>, transform_indices = @transform_3, window_bounds = array<i64: 256, 128>}, {pipeline_mode = #tpu.pipeline_mode<synchronous>, transform_indices = @transform_4, window_bounds = array<i64: 8, 512>}, {transform_indices = @transform_5, window_bounds = array<i64: 16, 128>}]} {
    %c0 = arith.constant 0 : index
    %c0_0 = arith.constant 0 : index
    %0 = vector.load %arg1[%c0, %c0_0] : memref<16x256xf32, #tpu.memory_space<vmem>>, vector<16x256xf32>
    %1 = arith.truncf %0 : vector<16x256xf32> to vector<16x256xbf16>
    %c0_1 = arith.constant 0 : index
    %c0_2 = arith.constant 0 : index
    %2 = vector.load %arg2[%c0_1, %c0_2] : memref<256x512xbf16, #tpu.memory_space<vmem>>, vector<256x512xbf16>
    %cst = arith.constant dense<0.000000e+00> : vector<16x512xf32>
    %3 = tpu.matmul %1, %2, %cst {dimension_numbers = #tpu.dot_dimension_numbers<[1], [0], [0], [1], [0, 0, 1, 1], [], []>} : vector<16x256xbf16>, vector<256x512xbf16>, vector<16x512xf32> -> vector<16x512xf32>
    %c0_3 = arith.constant 0 : index
    %c0_4 = arith.constant 0 : index
    %4 = vector.load %arg5[%c0_3, %c0_4] : memref<8x512xf32, #tpu.memory_space<vmem>>, vector<1x512xf32>
    %5 = vector.broadcast %4 : vector<1x512xf32> to vector<16x512xf32>
    %6 = arith.mulf %3, %5 : vector<16x512xf32>
    %c1 = arith.constant 1 : index
    %c0_5 = arith.constant 0 : index
    %7 = vector.load %arg5[%c1, %c0_5] : memref<8x512xf32, #tpu.memory_space<vmem>>, vector<1x512xf32>
    %8 = vector.broadcast %7 : vector<1x512xf32> to vector<16x512xf32>
    %9 = arith.addf %6, %8 : vector<16x512xf32>
    %cst_6 = arith.constant 0.000000e+00 : f32
    %10 = vector.broadcast %cst_6 : f32 to vector<16x512xf32>
    %11 = arith.maximumf %9, %10 : vector<16x512xf32>
    %12 = arith.truncf %11 : vector<16x512xf32> to vector<16x512xbf16>
    %c0_7 = arith.constant 0 : index
    %c0_8 = arith.constant 0 : index
    %13 = vector.load %arg3[%c0_7, %c0_8] : memref<512x256xbf16, #tpu.memory_space<vmem>>, vector<512x256xbf16>
    %cst_9 = arith.constant dense<0.000000e+00> : vector<16x256xf32>
    %14 = tpu.matmul %12, %13, %cst_9 {dimension_numbers = #tpu.dot_dimension_numbers<[1], [0], [0], [1], [0, 0, 1, 1], [], []>} : vector<16x512xbf16>, vector<512x256xbf16>, vector<16x256xf32> -> vector<16x256xf32>
    %c2 = arith.constant 2 : index
    %c0_10 = arith.constant 0 : index
    %15 = vector.load %arg5[%c2, %c0_10] : memref<8x512xf32, #tpu.memory_space<vmem>>, vector<1x256xf32>
    %16 = vector.broadcast %15 : vector<1x256xf32> to vector<16x256xf32>
    %17 = arith.mulf %14, %16 : vector<16x256xf32>
    %c3 = arith.constant 3 : index
    %c0_11 = arith.constant 0 : index
    %18 = vector.load %arg5[%c3, %c0_11] : memref<8x512xf32, #tpu.memory_space<vmem>>, vector<1x256xf32>
    %19 = vector.broadcast %18 : vector<1x256xf32> to vector<16x256xf32>
    %20 = arith.addf %17, %19 : vector<16x256xf32>
    %cst_12 = arith.constant 0.000000e+00 : f32
    %21 = vector.broadcast %cst_12 : f32 to vector<16x256xf32>
    %22 = arith.maximumf %20, %21 : vector<16x256xf32>
    %23 = arith.truncf %22 : vector<16x256xf32> to vector<16x256xbf16>
    %c0_13 = arith.constant 0 : index
    %c0_14 = arith.constant 0 : index
    %24 = vector.load %arg4[%c0_13, %c0_14] : memref<256x128xbf16, #tpu.memory_space<vmem>>, vector<256x128xbf16>
    %cst_15 = arith.constant dense<0.000000e+00> : vector<16x128xf32>
    %25 = tpu.matmul %23, %24, %cst_15 {dimension_numbers = #tpu.dot_dimension_numbers<[1], [0], [0], [1], [0, 0, 1, 1], [], []>} : vector<16x256xbf16>, vector<256x128xbf16>, vector<16x128xf32> -> vector<16x128xf32>
    %c4 = arith.constant 4 : index
    %c0_16 = arith.constant 0 : index
    %26 = vector.load %arg5[%c4, %c0_16] : memref<8x512xf32, #tpu.memory_space<vmem>>, vector<1x128xf32>
    %27 = vector.broadcast %26 : vector<1x128xf32> to vector<16x128xf32>
    %28 = arith.addf %25, %27 : vector<16x128xf32>
    %c0_17 = arith.constant 0 : index
    %c0_18 = arith.constant 0 : index
    %29 = vector.load %arg6[%c0_17, %c0_18] : memref<16x128xf32, #tpu.memory_space<vmem>>, vector<16x128xf32>
    tpu.vector_store %arg6[%c0_17, %c0_18], %28 {strides = array<i32>} : memref<16x128xf32, #tpu.memory_space<vmem>>, vector<16x128xf32>,
    return
  }
  func.func @transform_0(%arg0: i32) -> (i32, i32) {
    %c0_i32 = arith.constant 0 : i32
    %c0_i32_0 = arith.constant 0 : i32
    return %arg0, %c0_i32 : i32, i32
  }
  func.func @transform_1(%arg0: i32) -> (i32, i32) {
    %c0_i32 = arith.constant 0 : i32
    %c0_i32_0 = arith.constant 0 : i32
    %c0_i32_1 = arith.constant 0 : i32
    return %c0_i32, %c0_i32_0 : i32, i32
  }
  func.func @transform_2(%arg0: i32) -> (i32, i32) {
    %c0_i32 = arith.constant 0 : i32
    %c0_i32_0 = arith.constant 0 : i32
    %c0_i32_1 = arith.constant 0 : i32
    return %c0_i32, %c0_i32_0 : i32, i32
  }
  func.func @transform_3(%arg0: i32) -> (i32, i32) {
    %c0_i32 = arith.constant 0 : i32
    %c0_i32_0 = arith.constant 0 : i32
    %c0_i32_1 = arith.constant 0 : i32
    return %c0_i32, %c0_i32_0 : i32, i32
  }
  func.func @transform_4(%arg0: i32) -> (i32, i32) {
    %c0_i32 = arith.constant 0 : i32
    %c0_i32_0 = arith.constant 0 : i32
    %c0_i32_1 = arith.constant 0 : i32
    return %c0_i32, %c0_i32_0 : i32, i32
  }
  func.func @transform_5(%arg0: i32) -> (i32, i32) {
    %c0_i32 = arith.constant 0 : i32
    %c0_i32_0 = arith.constant 0 : i32
    return %arg0, %c0_i32 : i32, i32
  }
}

</mosaic_0001>

<llo_original>
// kernel: tile.48
$region0: #{tile.48}
  #allocation0 [shape = 's32[1]{0}', space=sflag, size = 0x4, scoped, tag = 'scoped memory for tile.48']
  %s0 = inlined_call_operand.vmem [shape: f32[16], index: 0, kind: input, shape index: {}]
  %s1 = inlined_call_operand.vmem [shape: f32[8,16], index: 1, kind: output, shape index: {}]
  // Predicated region
  $region2: #{tile.48} parent=0 // pred_check
    _
  $region3: #{tile.48} parent=0 // pred_check_branch
    %3 = sbr.rel (0) target = $region5
  $region4: #{tile.48} parent=0 // pred_region
    _
  $region5: #{tile.48} parent=0 // pred_fallthru
    _
  %v4 = vld [vmem:[%s0] ss:$0 sm:$0xff]
  %5 = vst [vmem:[%s1] sm:$0xff] %v4

// kernel: tile.43
$region0: #{tile.43}
  #allocation0 [shape = 's32[1]{0}', space=sflag, size = 0x4, scoped, tag = 'scoped memory for tile.43']
  %s0 = inlined_call_operand.vmem [shape: f32[32], index: 0, kind: input, shape index: {}]
  %s1 = inlined_call_operand.vmem [shape: f32[8,32], index: 1, kind: output, shape index: {}]
  // Predicated region
  $region2: #{tile.43} parent=0 // pred_check
    _
  $region3: #{tile.43} parent=0 // pred_check_branch
    %3 = sbr.rel (0) target = $region5
  $region4: #{tile.43} parent=0 // pred_region
    _
  $region5: #{tile.43} parent=0 // pred_fallthru
    _
  %v4 = vld [vmem:[%s0] ss:$0 sm:$0xff]
  %5 = vst [vmem:[%s1] sm:$0xff] %v4

// kernel: tile.33
$region0: #{tile.33}
  #allocation0 [shape = 's32[1]{0}', space=sflag, size = 0x4, scoped, tag = 'scoped memory for tile.33']
  %s0 = inlined_call_operand.vmem [shape: f32[64], index: 0, kind: input, shape index: {}]
  %s1 = inlined_call_operand.vmem [shape: f32[8,64], index: 1, kind: output, shape index: {}]
  // Predicated region
  $region2: #{tile.33} parent=0 // pred_check
    _
  $region3: #{tile.33} parent=0 // pred_check_branch
    %3 = sbr.rel (0) target = $region5
  $region4: #{tile.33} parent=0 // pred_region
    _
  $region5: #{tile.33} parent=0 // pred_fallthru
    _
  %v4 = vld [vmem:[%s0] ss:$0 sm:$0xff]
  %5 = vst [vmem:[%s1] sm:$0xff] %v4

// kernel: fully_connected_layer.3
$region0: #{fully_connected_layer.3}
  #allocation0 [shape = 'u32[]', space=smem, size = 0x4, offset = 0x4, fixed_abs, tag = 'smem constant byte address 0x4 - core index']
  #allocation1 [shape = 'u32[144,128]{1,0:T(1,128)}', space=vmem, size = 0x12000, scoped, tag = 'internal scratch']
  %s0 = inlined_call_operand.vmem [shape: f32[256,32], index: 0, kind: input, shape index: {}]
  %s1 = inlined_call_operand.vmem [shape: bf16[32,64], index: 1, kind: input, shape index: {}]
  %s2 = inlined_call_operand.vmem [shape: f32[2,2,64], index: 2, kind: output, shape index: {}]
  %s3 = sld [smem:[#allocation0]]
  $region41: #{fully_connected_layer.3} parent=0
    _
  %s5 = ssub.s32 1, %s3
  %s6 = scalar_select 0, %s5, %s3
  loop: start=0, step=1, limit=4
  $region2: #{fully_connected_layer.3} parent=0 // loop_pre_header
    _
  $region3: #{fully_connected_layer.3} parent=0 // loop_header
    %s8 = sphi 0, %s12
    %p9 = scmp.ge.s32.totalorder %s8, 4
    %s18 = sphi 0, %s20
    %s21 = sphi 0, %s18
    %s22 = sphi 0, %s21
    %s38 = sphi 0, %s22
    %s42 = sphi 0, %s42
    %s44 = sphi 0, %s42
    %s45 = sphi 0, %s44
    %s59 = sphi 0, %s45
    %s65 = sphi 0, %s67
    %s68 = sphi 0, %s65
    %s69 = sphi 0, %s68
    %s85 = sphi 0, %s69
  $region4: #{fully_connected_layer.3} parent=0 // loop_header_branch
    %11 = sbr.rel (%p9) target = $region8
  $region5: #{fully_connected_layer.3} parent=0 // loop_body
    %s13 = ssub.s32 %s8, 1
    %s14 = ssub.s32 %s8, 2
    %s15 = sadd.s32 %s8, 1
    %s16 = ssub.s32 %s8, %s15
    %p17 = scmp.eq.s32.totalorder %s16, 0
    %s19 = sadd.s32 %s18, 1
    %s20 = scalar_select %p17, %s18, %s19
    %p23 = pneg %p17
    %p24 = scmp.eq.s32.totalorder %s8, 1
    %p25 = por %p23, %p24
    %p26 = scmp.ne.s32.totalorder %s18, %s21
    %p27 = scmp.eq.s32.totalorder %s8, 0
    %p28 = por %p26, %p27
    %p29 = scmp.ne.s32.totalorder %s18, %s21
    %p30 = scmp.eq.s32.totalorder %s13, 1
    %p31 = por %p29, %p30
    %p32 = scmp.ne.s32.totalorder %s21, %s22
    %p33 = scmp.eq.s32.totalorder %s13, 0
    %p34 = por %p32, %p33
    %p35 = scmp.ne.s32.totalorder %s21, %s22
    %p36 = scmp.eq.s32.totalorder %s14, 1
    %p37 = por %p35, %p36
    %p39 = scmp.ne.s32.totalorder %s22, %s38
    %p40 = scmp.eq.s32.totalorder %s14, 0
    %p41 = por %p39, %p40
    %s43 = sadd.s32 %s42, 1
    %p46 = scmp.eq.s32.totalorder %s8, 1
    %p47 = scmp.ne.s32.totalorder %s42, %s44
    %p48 = scmp.eq.s32.totalorder %s8, 0
    %p49 = por %p47, %p48
    %p50 = scmp.ne.s32.totalorder %s42, %s44
    %p51 = scmp.eq.s32.totalorder %s13, 1
    %p52 = por %p50, %p51
    %p53 = scmp.ne.s32.totalorder %s44, %s45
    %p54 = scmp.eq.s32.totalorder %s13, 0
    %p55 = por %p53, %p54
    %p56 = scmp.ne.s32.totalorder %s44, %s45
    %p57 = scmp.eq.s32.totalorder %s14, 1
    %p58 = por %p56, %p57
    %p60 = scmp.ne.s32.totalorder %s45, %s59
    %p61 = scmp.eq.s32.totalorder %s14, 0
    %p62 = por %p60, %p61
    %s63 = ssub.s32 %s8, %s15
    %p64 = scmp.eq.s32.totalorder %s63, 0
    %s66 = sadd.s32 %s65, 1
    %s67 = scalar_select %p64, %s65, %s66
    %p70 = pneg %p64
    %p71 = scmp.eq.s32.totalorder %s8, 1
    %p72 = por %p70, %p71
    %p73 = scmp.ne.s32.totalorder %s65, %s68
    %p74 = scmp.eq.s32.totalorder %s8, 0
    %p75 = por %p73, %p74
    %p76 = scmp.ne.s32.totalorder %s65, %s68
    %p77 = scmp.eq.s32.totalorder %s13, 1
    %p78 = por %p76, %p77
    %p79 = scmp.ne.s32.totalorder %s68, %s69
    %p80 = scmp.eq.s32.totalorder %s13, 0
    %p81 = por %p79, %p80
    %p82 = scmp.ne.s32.totalorder %s68, %s69
    %p83 = scmp.eq.s32.totalorder %s14, 1
    %p84 = por %p82, %p83
    %p86 = scmp.ne.s32.totalorder %s69, %s85
    %p87 = scmp.eq.s32.totalorder %s14, 0
    %p88 = por %p86, %p87
    %p89 = scmp.le.s32.totalorder 1, %s8
    %p90 = scmp.lt.s32.totalorder %s8, 3
    %p91 = pnand %p89, %p90
    %p92 = pneg %p91
    // Predicated region
    $region9: #{fully_connected_layer.3} parent=5 // pred_check
      _
    $region10: #{fully_connected_layer.3} parent=5 // pred_check_branch
      %94 = sbr.rel (%p91) target = $region12
    $region11: #{fully_connected_layer.3} parent=5 // pred_region
      %s95 = ssub.s32 %s8, 1
      // Predicated region
      $region13: #{fully_connected_layer.3} parent=11 // pred_check
        %p96 = pneg %p55
      $region14: #{fully_connected_layer.3} parent=11 // pred_check_branch
        %98 = sbr.rel (%p96) target = $region16
      $region15: #{fully_connected_layer.3} parent=11 // pred_region
        _
      $region16: #{fully_connected_layer.3} parent=11 // pred_fallthru
        _
    $region12: #{fully_connected_layer.3} parent=5 // pred_fallthru
      _
    %p99 = scmp.lt.s32.totalorder %s8, 2
    // Predicated region
    $region17: #{fully_connected_layer.3} parent=5 // pred_check
      %p100 = pneg %p99
    $region18: #{fully_connected_layer.3} parent=5 // pred_check_branch
      %102 = sbr.rel (%p100) target = $region20
    $region19: #{fully_connected_layer.3} parent=5 // pred_region
      // Predicated region
      $region21: #{fully_connected_layer.3} parent=19 // pred_check
        %p103 = pneg %p28
      $region22: #{fully_connected_layer.3} parent=19 // pred_check_branch
        %105 = sbr.rel (%p103) target = $region24
      $region23: #{fully_connected_layer.3} parent=19 // pred_region
        %s106 = smul.u32 16, %s8
        %p107 = scmp.lt.s32.totalorder %s106, 31
        %s108 = scalar_select %p107, %s106, 31
        %s109 = smul.addr %s108, 8
        %s110 = scalar_lea.vmem %s0, %s109
        %s111 = smul.u32 16, %s8
      $region24: #{fully_connected_layer.3} parent=19 // pred_fallthru
        _
    $region20: #{fully_connected_layer.3} parent=5 // pred_fallthru
      _
    %p112 = scmp.le.s32.totalorder 1, %s8
    %p113 = scmp.lt.s32.totalorder %s8, 3
    %p114 = pnand %p112, %p113
    %p115 = pneg %p114
    // Predicated region
    $region25: #{fully_connected_layer.3} parent=5 // pred_check
      _
    $region26: #{fully_connected_layer.3} parent=5 // pred_check_branch
      %117 = sbr.rel (%p114) target = $region28
    $region27: #{fully_connected_layer.3} parent=5 // pred_region
      %s118 = ssub.s32 %s8, 1
      %s119 = smul.u32 16, %s13
      %p120 = scmp.lt.s32.totalorder %s119, 31
      %s121 = scalar_select %p120, %s119, 31
      %s122 = smul.addr %s121, 8
      %s123 = scalar_lea.vmem %s0, %s122
      %p124 = pneg %p34
      %p125 = pneg %p31
      %p126 = pneg %p55
      %p127 = pneg %p52
      %p128 = pneg %p81
      %p129 = pneg %p78
      %p130 = scmp.lt.s32.totalorder %s13, 1
      %s131 = scalar_select %p130, %s13, 1
      %s132 = smul.addr %s131, 2
      %s133 = scalar_lea.vmem %s2, %s132
      %s134 = smul.u32 16, %s13
      %p135 = scmp.lt.s32.totalorder %s134, 31
      %s136 = scalar_select %p135, %s134, 31
      %s137 = smul.addr %s136, 8
      %s138 = scalar_lea.vmem %s0, %s137
      %s139 = smul.u32 16, %s13
      %p140 = scmp.lt.s32.totalorder %s13, 1
      %s141 = scalar_select %p140, %s13, 1
      %s142 = smul.addr %s141, 2
      %s143 = scalar_lea.vmem %s2, %s142
      %v145 = vld [vmem:[%s138] sm:$0xff]
      %v146 = vld [vmem:[%s138 + $0x8] sm:$0xff]
      %v147 = vld [vmem:[%s138 + $0x10] sm:$0xff]
      %v148 = vld [vmem:[%s138 + $0x18] sm:$0xff]
      %v149 = vld [vmem:[%s138 + $0x20] sm:$0xff]
      %v150 = vld [vmem:[%s138 + $0x28] sm:$0xff]
      %v151 = vld [vmem:[%s138 + $0x30] sm:$0xff]
      %v152 = vld [vmem:[%s138 + $0x38] sm:$0xff]
      %v153 = vld [vmem:[%s138 + $0x40] sm:$0xff]
      %v154 = vld [vmem:[%s138 + $0x48] sm:$0xff]
      %v155 = vld [vmem:[%s138 + $0x50] sm:$0xff]
      %v156 = vld [vmem:[%s138 + $0x58] sm:$0xff]
      %v157 = vld [vmem:[%s138 + $0x60] sm:$0xff]
      %v158 = vld [vmem:[%s138 + $0x68] sm:$0xff]
      %v159 = vld [vmem:[%s138 + $0x70] sm:$0xff]
      %v160 = vld [vmem:[%s138 + $0x78] sm:$0xff]
      %v161 = vpack.c.bf16 %v146, %v145
      %v162 = vpack.c.bf16 %v148, %v147
      %v163 = vpack.c.bf16 %v150, %v149
      %v164 = vpack.c.bf16 %v152, %v151
      %v165 = vpack.c.bf16 %v154, %v153
      %v166 = vpack.c.bf16 %v156, %v155
      %v167 = vpack.c.bf16 %v158, %v157
      %v168 = vpack.c.bf16 %v160, %v159
      %v169 = vld [vmem:[%s1] sm:$0xf]
      %v170 = vld [vmem:[%s1 + $0x4] sm:$0xf]
      %v171 = vld [vmem:[%s1 + $0x8] sm:$0xf]
      %v172 = vld [vmem:[%s1 + $0xc] sm:$0xf]
      %v177 = vunpack.c.l.b16 %v169
      %v178 = vunpack.c.l.b16 %v170
      %v179 = vunpack.c.l.b16 %v171
      %v180 = vunpack.c.l.b16 %v172
      %v181 = vpack.c.b16 %v178, %v177
      %v182 = vpack.c.b16 %v180, %v179
      %vm185 = vcmask 261120
      %v187 = vsel %vm185, %v161, 0
      %v190 = vsel %vm185, %v162, 0
      %v193 = vsel %vm185, %v163, 0
      %v196 = vsel %vm185, %v164, 0
      %v199 = vsel %vm185, %v165, 0
      %v202 = vsel %vm185, %v166, 0
      %v205 = vsel %vm185, %v167, 0
      %v208 = vsel %vm185, %v168, 0
      %210 = vmatprep.subr.bf16.mxu0 0
      %211 = vmatpush1.bf16.msra.mxu0 0
      %212 = vmatprep.subr.bf16.mxu0 0
      %213 = vmatpush1.bf16.msra.mxu0 0
      %214 = vmatprep.subr.bf16.mxu0 0
      %215 = vmatpush1.bf16.msra.mxu0 0
      %216 = vmatprep.subr.bf16.mxu0 0
      %217 = vmatpush1.bf16.msra.mxu0 0
      %218 = vmatprep.subr.bf16.mxu0 0
      %219 = vmatpush1.bf16.msra.mxu0 0
      %220 = vmatprep.subr.bf16.mxu0 0
      %221 = vmatpush1.bf16.msra.mxu0 0
      %222 = vmatprep.subr.bf16.mxu0 0
      %223 = vmatpush1.bf16.msra.mxu0 %v182
      %224 = vmatprep.subr.bf16.mxu0 0
      %225 = vmatpush1.bf16.msra.mxu0 %v181
      %226 = vmatprep.subr.bf16.mxu0 0
      %227 = vmatpush2.bf16.msra.mxu0 0
      %228 = vmatprep.subr.bf16.mxu0 0
      %229 = vmatpush2.bf16.msra.mxu0 0
      %230 = vmatprep.subr.bf16.mxu0 0
      %231 = vmatpush2.bf16.msra.mxu0 0
      %232 = vmatprep.subr.bf16.mxu0 0
      %233 = vmatpush2.bf16.msra.mxu0 0
      %234 = vmatprep.subr.bf16.mxu0 0
      %235 = vmatpush2.bf16.msra.mxu0 0
      %236 = vmatprep.subr.bf16.mxu0 0
      %237 = vmatpush2.bf16.msra.mxu0 0
      %238 = vmatprep.subr.bf16.mxu0 0
      %239 = vmatpush2.bf16.msra.mxu0 0
      %240 = vmatprep.subr.bf16.mxu0 0
      %241 = vmatpush2.bf16.msra.mxu0 0
      %242 = vmatprep.mubr.bf16.mxu0 0
      %243 = vmatmul.mubr.bf16.gmra.mxu0 %v187
      %v244 = vpop.f32.mrf.mxu0
      %v245 = vadd.f32 0.0, %v244
      %v246 = vpop.f32.mrf.mxu0
      %v247 = vpop.f32.mrf.mxu0
      %v248 = vadd.f32 0.0, %v247
      %v249 = vpop.f32.mrf.mxu0
      %250 = vmatprep.mubr.bf16.mxu0 0
      %251 = vmatmul.mubr.bf16.gmra.mxu0 %v190
      %v252 = vpop.f32.mrf.mxu0
      %v253 = vadd.f32 0.0, %v252
      %v254 = vpop.f32.mrf.mxu0
      %v255 = vpop.f32.mrf.mxu0
      %v256 = vadd.f32 0.0, %v255
      %v257 = vpop.f32.mrf.mxu0
      %258 = vmatprep.mubr.bf16.mxu0 0
      %259 = vmatmul.mubr.bf16.gmra.mxu0 %v193
      %v260 = vpop.f32.mrf.mxu0
      %v261 = vadd.f32 0.0, %v260
      %v262 = vpop.f32.mrf.mxu0
      %v263 = vpop.f32.mrf.mxu0
      %v264 = vadd.f32 0.0, %v263
      %v265 = vpop.f32.mrf.mxu0
      %266 = vmatprep.mubr.bf16.mxu0 0
      %267 = vmatmul.mubr.bf16.gmra.mxu0 %v196
      %v268 = vpop.f32.mrf.mxu0
      %v269 = vadd.f32 0.0, %v268
      %v270 = vpop.f32.mrf.mxu0
      %v271 = vpop.f32.mrf.mxu0
      %v272 = vadd.f32 0.0, %v271
      %v273 = vpop.f32.mrf.mxu0
      %274 = vmatprep.mubr.bf16.mxu0 0
      %275 = vmatmul.mubr.bf16.gmra.mxu0 %v199
      %v276 = vpop.f32.mrf.mxu0
      %v277 = vadd.f32 0.0, %v276
      %v278 = vpop.f32.mrf.mxu0
      %v279 = vpop.f32.mrf.mxu0
      %v280 = vadd.f32 0.0, %v279
      %v281 = vpop.f32.mrf.mxu0
      %282 = vmatprep.mubr.bf16.mxu0 0
      %283 = vmatmul.mubr.bf16.gmra.mxu0 %v202
      %v284 = vpop.f32.mrf.mxu0
      %v285 = vadd.f32 0.0, %v284
      %v286 = vpop.f32.mrf.mxu0
      %v287 = vpop.f32.mrf.mxu0
      %v288 = vadd.f32 0.0, %v287
      %v289 = vpop.f32.mrf.mxu0
      %290 = vmatprep.mubr.bf16.mxu0 0
      %291 = vmatmul.mubr.bf16.gmra.mxu0 %v205
      %v292 = vpop.f32.mrf.mxu0
      %v293 = vadd.f32 0.0, %v292
      %v294 = vpop.f32.mrf.mxu0
      %v295 = vpop.f32.mrf.mxu0
      %v296 = vadd.f32 0.0, %v295
      %v297 = vpop.f32.mrf.mxu0
      %298 = vmatprep.mubr.bf16.mxu0 0
      %299 = vmatmul.mubr.bf16.gmra.mxu0 %v208
      %v300 = vpop.f32.mrf.mxu0
      %v301 = vadd.f32 0.0, %v300
      %v302 = vpop.f32.mrf.mxu0
      %v303 = vpop.f32.mrf.mxu0
      %v304 = vadd.f32 0.0, %v303
      %v305 = vpop.f32.mrf.mxu0
      %306 = vdwg.mxu0
      %vm307 = vcmask 523264
      %v308 = vsel %vm307, %v245, 0.0
      %v309 = vsel %vm307, %v248, 0.0
      %v310 = vadd.f32 %v308, %v309
      %v311 = vsel %vm307, %v253, 0.0
      %v312 = vadd.f32 %v310, %v311
      %v313 = vsel %vm307, %v256, 0.0
      %v314 = vadd.f32 %v312, %v313
      %v315 = vsel %vm307, %v261, 0.0
      %v316 = vadd.f32 %v314, %v315
      %v317 = vsel %vm307, %v264, 0.0
      %v318 = vadd.f32 %v316, %v317
      %v319 = vsel %vm307, %v269, 0.0
      %v320 = vadd.f32 %v318, %v319
      %v321 = vsel %vm307, %v272, 0.0
      %v322 = vadd.f32 %v320, %v321
      %v323 = vsel %vm307, %v277, 0.0
      %v324 = vadd.f32 %v322, %v323
      %v325 = vsel %vm307, %v280, 0.0
      %v326 = vadd.f32 %v324, %v325
      %v327 = vsel %vm307, %v285, 0.0
      %v328 = vadd.f32 %v326, %v327
      %v329 = vsel %vm307, %v288, 0.0
      %v330 = vadd.f32 %v328, %v329
      %v331 = vsel %vm307, %v293, 0.0
      %v332 = vadd.f32 %v330, %v331
      %v333 = vsel %vm307, %v296, 0.0
      %v334 = vadd.f32 %v332, %v333
      %v335 = vsel %vm307, %v301, 0.0
      %v336 = vadd.f32 %v334, %v335
      %v337 = vsel %vm307, %v304, 0.0
      %v338 = vadd.f32 %v336, %v337
      %v339 = vrot.slane %v338, 4
      %v340 = vadd.f32 %v338, %v339
      %v341 = vrot.slane %v340, 2
      %v342 = vadd.f32 %v340, %v341
      %v343 = vrot.slane %v342, 1
      %v344 = vadd.f32 %v342, %v343
      %vm345 = vcmask 516096
      %346 = vst.msk [vmem:[%s143] sm:$0x1] %vm345, %v344
      %v347 = vmul.f32 %v245, %v245
      %v348 = vmul.f32 %v248, %v248
      %v349 = vmul.f32 %v253, %v253
      %v350 = vmul.f32 %v256, %v256
      %v351 = vmul.f32 %v261, %v261
      %v352 = vmul.f32 %v264, %v264
      %v353 = vmul.f32 %v269, %v269
      %v354 = vmul.f32 %v272, %v272
      %v355 = vmul.f32 %v277, %v277
      %v356 = vmul.f32 %v280, %v280
      %v357 = vmul.f32 %v285, %v285
      %v358 = vmul.f32 %v288, %v288
      %v359 = vmul.f32 %v293, %v293
      %v360 = vmul.f32 %v296, %v296
      %v361 = vmul.f32 %v301, %v301
      %v362 = vmul.f32 %v304, %v304
      %v363 = vsel %vm307, %v347, 0.0
      %v364 = vsel %vm307, %v348, 0.0
      %v365 = vadd.f32 %v363, %v364
      %v366 = vsel %vm307, %v349, 0.0
      %v367 = vadd.f32 %v365, %v366
      %v368 = vsel %vm307, %v350, 0.0
      %v369 = vadd.f32 %v367, %v368
      %v370 = vsel %vm307, %v351, 0.0
      %v371 = vadd.f32 %v369, %v370
      %v372 = vsel %vm307, %v352, 0.0
      %v373 = vadd.f32 %v371, %v372
      %v374 = vsel %vm307, %v353, 0.0
      %v375 = vadd.f32 %v373, %v374
      %v376 = vsel %vm307, %v354, 0.0
      %v377 = vadd.f32 %v375, %v376
      %v378 = vsel %vm307, %v355, 0.0
      %v379 = vadd.f32 %v377, %v378
      %v380 = vsel %vm307, %v356, 0.0
      %v381 = vadd.f32 %v379, %v380
      %v382 = vsel %vm307, %v357, 0.0
      %v383 = vadd.f32 %v381, %v382
      %v384 = vsel %vm307, %v358, 0.0
      %v385 = vadd.f32 %v383, %v384
      %v386 = vsel %vm307, %v359, 0.0
      %v387 = vadd.f32 %v385, %v386
      %v388 = vsel %vm307, %v360, 0.0
      %v389 = vadd.f32 %v387, %v388
      %v390 = vsel %vm307, %v361, 0.0
      %v391 = vadd.f32 %v389, %v390
      %v392 = vsel %vm307, %v362, 0.0
      %v393 = vadd.f32 %v391, %v392
      %v394 = vrot.slane %v393, 4
      %v395 = vadd.f32 %v393, %v394
      %v396 = vrot.slane %v395, 2
      %v397 = vadd.f32 %v395, %v396
      %v398 = vrot.slane %v397, 1
      %v399 = vadd.f32 %v397, %v398
      %400 = vst.msk [vmem:[%s143 + $0x1] sm:$0x1] %vm345, %v399
      %p401 = scmp.lt.s32.totalorder %s13, 1
      %s402 = scalar_select %p401, %s13, 1
      %s403 = smul.addr %s402, 2
      %s404 = scalar_lea.vmem %s2, %s403
      // Predicated region
      $region29: #{fully_connected_layer.3} parent=27 // pred_check
        %p405 = pneg %p78
      $region30: #{fully_connected_layer.3} parent=27 // pred_check_branch
        %407 = sbr.rel (%p405) target = $region32
      $region31: #{fully_connected_layer.3} parent=27 // pred_region
        _
      $region32: #{fully_connected_layer.3} parent=27 // pred_fallthru
        _
    $region28: #{fully_connected_layer.3} parent=5 // pred_fallthru
      _
    %p408 = scmp.le.s32.totalorder 2, %s8
    // Predicated region
    $region33: #{fully_connected_layer.3} parent=5 // pred_check
      %p409 = pneg %p408
    $region34: #{fully_connected_layer.3} parent=5 // pred_check_branch
      %411 = sbr.rel (%p409) target = $region36
    $region35: #{fully_connected_layer.3} parent=5 // pred_region
      %s412 = ssub.s32 %s8, 2
      // Predicated region
      $region37: #{fully_connected_layer.3} parent=35 // pred_check
        %p413 = pneg %p84
      $region38: #{fully_connected_layer.3} parent=35 // pred_check_branch
        %415 = sbr.rel (%p413) target = $region40
      $region39: #{fully_connected_layer.3} parent=35 // pred_region
        %p416 = scmp.lt.s32.totalorder %s14, 1
        %s417 = scalar_select %p416, %s14, 1
        %s418 = smul.addr %s417, 2
        %s419 = scalar_lea.vmem %s2, %s418
      $region40: #{fully_connected_layer.3} parent=35 // pred_fallthru
        _
    $region36: #{fully_connected_layer.3} parent=5 // pred_fallthru
      _
  $region6: #{fully_connected_layer.3} parent=0 // loop_footer
    %s12 = sadd.s32 1, %s8
  $region7: #{fully_connected_layer.3} parent=0 // loop_footer_branch
    %7 = sbr.rel target = $region3
  $region8: #{fully_connected_layer.3} parent=0 // loop_exit
    _

// kernel: fully_connected_layer.4
$region0: #{fully_connected_layer.4}
  #allocation0 [shape = 'u32[]', space=smem, size = 0x4, offset = 0x4, fixed_abs, tag = 'smem constant byte address 0x4 - core index']
  #allocation1 [shape = 'u32[144,128]{1,0:T(1,128)}', space=vmem, size = 0x12000, scoped, tag = 'internal scratch']
  %s0 = inlined_call_operand.vmem [shape: f32[256,32], index: 0, kind: input, shape index: {}]
  %s1 = inlined_call_operand.vmem [shape: bf16[32,64], index: 1, kind: input, shape index: {}]
  %s2 = inlined_call_operand.vmem [shape: bf16[64,32], index: 2, kind: input, shape index: {}]
  %s3 = inlined_call_operand.vmem [shape: f32[8,64], index: 3, kind: input, shape index: {}]
  %s4 = inlined_call_operand.vmem [shape: f32[2,2,32], index: 4, kind: output, shape index: {}]
  %s5 = sld [smem:[#allocation0]]
  $region49: #{fully_connected_layer.4} parent=0
    _
  %s7 = ssub.s32 1, %s5
  %s8 = scalar_select 0, %s7, %s5
  loop: start=0, step=1, limit=4
  $region2: #{fully_connected_layer.4} parent=0 // loop_pre_header
    _
  $region3: #{fully_connected_layer.4} parent=0 // loop_header
    %s10 = sphi 0, %s14
    %p11 = scmp.ge.s32.totalorder %s10, 4
    %s20 = sphi 0, %s22
    %s23 = sphi 0, %s20
    %s24 = sphi 0, %s23
    %s40 = sphi 0, %s24
    %s44 = sphi 0, %s44
    %s46 = sphi 0, %s44
    %s47 = sphi 0, %s46
    %s61 = sphi 0, %s47
    %s65 = sphi 0, %s65
    %s67 = sphi 0, %s65
    %s68 = sphi 0, %s67
    %s82 = sphi 0, %s68
    %s86 = sphi 0, %s86
    %s88 = sphi 0, %s86
    %s89 = sphi 0, %s88
    %s103 = sphi 0, %s89
    %s109 = sphi 0, %s111
    %s112 = sphi 0, %s109
    %s113 = sphi 0, %s112
    %s129 = sphi 0, %s113
  $region4: #{fully_connected_layer.4} parent=0 // loop_header_branch
    %13 = sbr.rel (%p11) target = $region8
  $region5: #{fully_connected_layer.4} parent=0 // loop_body
    %s15 = ssub.s32 %s10, 1
    %s16 = ssub.s32 %s10, 2
    %s17 = sadd.s32 %s10, 1
    %s18 = ssub.s32 %s10, %s17
    %p19 = scmp.eq.s32.totalorder %s18, 0
    %s21 = sadd.s32 %s20, 1
    %s22 = scalar_select %p19, %s20, %s21
    %p25 = pneg %p19
    %p26 = scmp.eq.s32.totalorder %s10, 1
    %p27 = por %p25, %p26
    %p28 = scmp.ne.s32.totalorder %s20, %s23
    %p29 = scmp.eq.s32.totalorder %s10, 0
    %p30 = por %p28, %p29
    %p31 = scmp.ne.s32.totalorder %s20, %s23
    %p32 = scmp.eq.s32.totalorder %s15, 1
    %p33 = por %p31, %p32
    %p34 = scmp.ne.s32.totalorder %s23, %s24
    %p35 = scmp.eq.s32.totalorder %s15, 0
    %p36 = por %p34, %p35
    %p37 = scmp.ne.s32.totalorder %s23, %s24
    %p38 = scmp.eq.s32.totalorder %s16, 1
    %p39 = por %p37, %p38
    %p41 = scmp.ne.s32.totalorder %s24, %s40
    %p42 = scmp.eq.s32.totalorder %s16, 0
    %p43 = por %p41, %p42
    %s45 = sadd.s32 %s44, 1
    %p48 = scmp.eq.s32.totalorder %s10, 1
    %p49 = scmp.ne.s32.totalorder %s44, %s46
    %p50 = scmp.eq.s32.totalorder %s10, 0
    %p51 = por %p49, %p50
    %p52 = scmp.ne.s32.totalorder %s44, %s46
    %p53 = scmp.eq.s32.totalorder %s15, 1
    %p54 = por %p52, %p53
    %p55 = scmp.ne.s32.totalorder %s46, %s47
    %p56 = scmp.eq.s32.totalorder %s15, 0
    %p57 = por %p55, %p56
    %p58 = scmp.ne.s32.totalorder %s46, %s47
    %p59 = scmp.eq.s32.totalorder %s16, 1
    %p60 = por %p58, %p59
    %p62 = scmp.ne.s32.totalorder %s47, %s61
    %p63 = scmp.eq.s32.totalorder %s16, 0
    %p64 = por %p62, %p63
    %s66 = sadd.s32 %s65, 1
    %p69 = scmp.eq.s32.totalorder %s10, 1
    %p70 = scmp.ne.s32.totalorder %s65, %s67
    %p71 = scmp.eq.s32.totalorder %s10, 0
    %p72 = por %p70, %p71
    %p73 = scmp.ne.s32.totalorder %s65, %s67
    %p74 = scmp.eq.s32.totalorder %s15, 1
    %p75 = por %p73, %p74
    %p76 = scmp.ne.s32.totalorder %s67, %s68
    %p77 = scmp.eq.s32.totalorder %s15, 0
    %p78 = por %p76, %p77
    %p79 = scmp.ne.s32.totalorder %s67, %s68
    %p80 = scmp.eq.s32.totalorder %s16, 1
    %p81 = por %p79, %p80
    %p83 = scmp.ne.s32.totalorder %s68, %s82
    %p84 = scmp.eq.s32.totalorder %s16, 0
    %p85 = por %p83, %p84
    %s87 = sadd.s32 %s86, 1
    %p90 = scmp.eq.s32.totalorder %s10, 1
    %p91 = scmp.ne.s32.totalorder %s86, %s88
    %p92 = scmp.eq.s32.totalorder %s10, 0
    %p93 = por %p91, %p92
    %p94 = scmp.ne.s32.totalorder %s86, %s88
    %p95 = scmp.eq.s32.totalorder %s15, 1
    %p96 = por %p94, %p95
    %p97 = scmp.ne.s32.totalorder %s88, %s89
    %p98 = scmp.eq.s32.totalorder %s15, 0
    %p99 = por %p97, %p98
    %p100 = scmp.ne.s32.totalorder %s88, %s89
    %p101 = scmp.eq.s32.totalorder %s16, 1
    %p102 = por %p100, %p101
    %p104 = scmp.ne.s32.totalorder %s89, %s103
    %p105 = scmp.eq.s32.totalorder %s16, 0
    %p106 = por %p104, %p105
    %s107 = ssub.s32 %s10, %s17
    %p108 = scmp.eq.s32.totalorder %s107, 0
    %s110 = sadd.s32 %s109, 1
    %s111 = scalar_select %p108, %s109, %s110
    %p114 = pneg %p108
    %p115 = scmp.eq.s32.totalorder %s10, 1
    %p116 = por %p114, %p115
    %p117 = scmp.ne.s32.totalorder %s109, %s112
    %p118 = scmp.eq.s32.totalorder %s10, 0
    %p119 = por %p117, %p118
    %p120 = scmp.ne.s32.totalorder %s109, %s112
    %p121 = scmp.eq.s32.totalorder %s15, 1
    %p122 = por %p120, %p121
    %p123 = scmp.ne.s32.totalorder %s112, %s113
    %p124 = scmp.eq.s32.totalorder %s15, 0
    %p125 = por %p123, %p124
    %p126 = scmp.ne.s32.totalorder %s112, %s113
    %p127 = scmp.eq.s32.totalorder %s16, 1
    %p128 = por %p126, %p127
    %p130 = scmp.ne.s32.totalorder %s113, %s129
    %p131 = scmp.eq.s32.totalorder %s16, 0
    %p132 = por %p130, %p131
    %p133 = scmp.le.s32.totalorder 1, %s10
    %p134 = scmp.lt.s32.totalorder %s10, 3
    %p135 = pnand %p133, %p134
    %p136 = pneg %p135
    // Predicated region
    $region9: #{fully_connected_layer.4} parent=5 // pred_check
      _
    $region10: #{fully_connected_layer.4} parent=5 // pred_check_branch
      %138 = sbr.rel (%p135) target = $region12
    $region11: #{fully_connected_layer.4} parent=5 // pred_region
      %s139 = ssub.s32 %s10, 1
      // Predicated region
      $region13: #{fully_connected_layer.4} parent=11 // pred_check
        %p140 = pneg %p57
      $region14: #{fully_connected_layer.4} parent=11 // pred_check_branch
        %142 = sbr.rel (%p140) target = $region16
      $region15: #{fully_connected_layer.4} parent=11 // pred_region
        _
      $region16: #{fully_connected_layer.4} parent=11 // pred_fallthru
        _
      // Predicated region
      $region17: #{fully_connected_layer.4} parent=11 // pred_check
        %p143 = pneg %p78
      $region18: #{fully_connected_layer.4} parent=11 // pred_check_branch
        %145 = sbr.rel (%p143) target = $region20
      $region19: #{fully_connected_layer.4} parent=11 // pred_region
        _
      $region20: #{fully_connected_layer.4} parent=11 // pred_fallthru
        _
      // Predicated region
      $region21: #{fully_connected_layer.4} parent=11 // pred_check
        %p146 = pneg %p99
      $region22: #{fully_connected_layer.4} parent=11 // pred_check_branch
        %148 = sbr.rel (%p146) target = $region24
      $region23: #{fully_connected_layer.4} parent=11 // pred_region
        _
      $region24: #{fully_connected_layer.4} parent=11 // pred_fallthru
        _
    $region12: #{fully_connected_layer.4} parent=5 // pred_fallthru
      _
    %p149 = scmp.lt.s32.totalorder %s10, 2
    // Predicated region
    $region25: #{fully_connected_layer.4} parent=5 // pred_check
      %p150 = pneg %p149
    $region26: #{fully_connected_layer.4} parent=5 // pred_check_branch
      %152 = sbr.rel (%p150) target = $region28
    $region27: #{fully_connected_layer.4} parent=5 // pred_region
      // Predicated region
      $region29: #{fully_connected_layer.4} parent=27 // pred_check
        %p153 = pneg %p30
      $region30: #{fully_connected_layer.4} parent=27 // pred_check_branch
        %155 = sbr.rel (%p153) target = $region32
      $region31: #{fully_connected_layer.4} parent=27 // pred_region
        %s156 = smul.u32 16, %s10
        %p157 = scmp.lt.s32.totalorder %s156, 31
        %s158 = scalar_select %p157, %s156, 31
        %s159 = smul.addr %s158, 8
        %s160 = scalar_lea.vmem %s0, %s159
        %s161 = smul.u32 16, %s10
      $region32: #{fully_connected_layer.4} parent=27 // pred_fallthru
        _
    $region28: #{fully_connected_layer.4} parent=5 // pred_fallthru
      _
    %p162 = scmp.le.s32.totalorder 1, %s10
    %p163 = scmp.lt.s32.totalorder %s10, 3
    %p164 = pnand %p162, %p163
    %p165 = pneg %p164
    // Predicated region
    $region33: #{fully_connected_layer.4} parent=5 // pred_check
      _
    $region34: #{fully_connected_layer.4} parent=5 // pred_check_branch
      %167 = sbr.rel (%p164) target = $region36
    $region35: #{fully_connected_layer.4} parent=5 // pred_region
      %s168 = ssub.s32 %s10, 1
      %s169 = smul.u32 16, %s15
      %p170 = scmp.lt.s32.totalorder %s169, 31
      %s171 = scalar_select %p170, %s169, 31
      %s172 = smul.addr %s171, 8
      %s173 = scalar_lea.vmem %s0, %s172
      %p174 = pneg %p36
      %p175 = pneg %p33
      %p176 = pneg %p57
      %p177 = pneg %p54
      %p178 = pneg %p78
      %p179 = pneg %p75
      %p180 = pneg %p99
      %p181 = pneg %p96
      %p182 = pneg %p125
      %p183 = pneg %p122
      %p184 = scmp.lt.s32.totalorder %s15, 1
      %s185 = scalar_select %p184, %s15, 1
      %s186 = smul.addr %s185, 2
      %s187 = scalar_lea.vmem %s4, %s186
      %s188 = smul.u32 16, %s15
      %p189 = scmp.lt.s32.totalorder %s188, 31
      %s190 = scalar_select %p189, %s188, 31
      %s191 = smul.addr %s190, 8
      %s192 = scalar_lea.vmem %s0, %s191
      %s193 = smul.u32 16, %s15
      %p194 = scmp.lt.s32.totalorder %s15, 1
      %s195 = scalar_select %p194, %s15, 1
      %s196 = smul.addr %s195, 2
      %s197 = scalar_lea.vmem %s4, %s196
      %v199 = vld [vmem:[%s192] sm:$0xff]
      %v200 = vld [vmem:[%s192 + $0x8] sm:$0xff]
      %v201 = vld [vmem:[%s192 + $0x10] sm:$0xff]
      %v202 = vld [vmem:[%s192 + $0x18] sm:$0xff]
      %v203 = vld [vmem:[%s192 + $0x20] sm:$0xff]
      %v204 = vld [vmem:[%s192 + $0x28] sm:$0xff]
      %v205 = vld [vmem:[%s192 + $0x30] sm:$0xff]
      %v206 = vld [vmem:[%s192 + $0x38] sm:$0xff]
      %v207 = vld [vmem:[%s192 + $0x40] sm:$0xff]
      %v208 = vld [vmem:[%s192 + $0x48] sm:$0xff]
      %v209 = vld [vmem:[%s192 + $0x50] sm:$0xff]
      %v210 = vld [vmem:[%s192 + $0x58] sm:$0xff]
      %v211 = vld [vmem:[%s192 + $0x60] sm:$0xff]
      %v212 = vld [vmem:[%s192 + $0x68] sm:$0xff]
      %v213 = vld [vmem:[%s192 + $0x70] sm:$0xff]
      %v214 = vld [vmem:[%s192 + $0x78] sm:$0xff]
      %v215 = vpack.c.bf16 %v200, %v199
      %v216 = vpack.c.bf16 %v202, %v201
      %v217 = vpack.c.bf16 %v204, %v203
      %v218 = vpack.c.bf16 %v206, %v205
      %v219 = vpack.c.bf16 %v208, %v207
      %v220 = vpack.c.bf16 %v210, %v209
      %v221 = vpack.c.bf16 %v212, %v211
      %v222 = vpack.c.bf16 %v214, %v213
      %v223 = vld [vmem:[%s1] sm:$0xf]
      %v224 = vld [vmem:[%s1 + $0x4] sm:$0xf]
      %v225 = vld [vmem:[%s1 + $0x8] sm:$0xf]
      %v226 = vld [vmem:[%s1 + $0xc] sm:$0xf]
      %v231 = vunpack.c.l.b16 %v223
      %v232 = vunpack.c.l.b16 %v224
      %v233 = vunpack.c.l.b16 %v225
      %v234 = vunpack.c.l.b16 %v226
      %v235 = vpack.c.b16 %v232, %v231
      %v236 = vpack.c.b16 %v234, %v233
      %vm239 = vcmask 261120
      %v241 = vsel %vm239, %v215, 0
      %v244 = vsel %vm239, %v216, 0
      %v247 = vsel %vm239, %v217, 0
      %v250 = vsel %vm239, %v218, 0
      %v253 = vsel %vm239, %v219, 0
      %v256 = vsel %vm239, %v220, 0
      %v259 = vsel %vm239, %v221, 0
      %v262 = vsel %vm239, %v222, 0
      %264 = vmatprep.subr.bf16.mxu0 0
      %265 = vmatpush1.bf16.msra.mxu0 0
      %266 = vmatprep.subr.bf16.mxu0 0
      %267 = vmatpush1.bf16.msra.mxu0 0
      %268 = vmatprep.subr.bf16.mxu0 0
      %269 = vmatpush1.bf16.msra.mxu0 0
      %270 = vmatprep.subr.bf16.mxu0 0
      %271 = vmatpush1.bf16.msra.mxu0 0
      %272 = vmatprep.subr.bf16.mxu0 0
      %273 = vmatpush1.bf16.msra.mxu0 0
      %274 = vmatprep.subr.bf16.mxu0 0
      %275 = vmatpush1.bf16.msra.mxu0 0
      %276 = vmatprep.subr.bf16.mxu0 0
      %277 = vmatpush1.bf16.msra.mxu0 %v236
      %278 = vmatprep.subr.bf16.mxu0 0
      %279 = vmatpush1.bf16.msra.mxu0 %v235
      %280 = vmatprep.subr.bf16.mxu0 0
      %281 = vmatpush2.bf16.msra.mxu0 0
      %282 = vmatprep.subr.bf16.mxu0 0
      %283 = vmatpush2.bf16.msra.mxu0 0
      %284 = vmatprep.subr.bf16.mxu0 0
      %285 = vmatpush2.bf16.msra.mxu0 0
      %286 = vmatprep.subr.bf16.mxu0 0
      %287 = vmatpush2.bf16.msra.mxu0 0
      %288 = vmatprep.subr.bf16.mxu0 0
      %289 = vmatpush2.bf16.msra.mxu0 0
      %290 = vmatprep.subr.bf16.mxu0 0
      %291 = vmatpush2.bf16.msra.mxu0 0
      %292 = vmatprep.subr.bf16.mxu0 0
      %293 = vmatpush2.bf16.msra.mxu0 0
      %294 = vmatprep.subr.bf16.mxu0 0
      %295 = vmatpush2.bf16.msra.mxu0 0
      %296 = vmatprep.mubr.bf16.mxu0 0
      %297 = vmatmul.mubr.bf16.gmra.mxu0 %v241
      %v298 = vpop.f32.mrf.mxu0
      %v299 = vadd.f32 0.0, %v298
      %v300 = vpop.f32.mrf.mxu0
      %v301 = vpop.f32.mrf.mxu0
      %v302 = vadd.f32 0.0, %v301
      %v303 = vpop.f32.mrf.mxu0
      %304 = vmatprep.mubr.bf16.mxu0 0
      %305 = vmatmul.mubr.bf16.gmra.mxu0 %v244
      %v306 = vpop.f32.mrf.mxu0
      %v307 = vadd.f32 0.0, %v306
      %v308 = vpop.f32.mrf.mxu0
      %v309 = vpop.f32.mrf.mxu0
      %v310 = vadd.f32 0.0, %v309
      %v311 = vpop.f32.mrf.mxu0
      %312 = vmatprep.mubr.bf16.mxu0 0
      %313 = vmatmul.mubr.bf16.gmra.mxu0 %v247
      %v314 = vpop.f32.mrf.mxu0
      %v315 = vadd.f32 0.0, %v314
      %v316 = vpop.f32.mrf.mxu0
      %v317 = vpop.f32.mrf.mxu0
      %v318 = vadd.f32 0.0, %v317
      %v319 = vpop.f32.mrf.mxu0
      %320 = vmatprep.mubr.bf16.mxu0 0
      %321 = vmatmul.mubr.bf16.gmra.mxu0 %v250
      %v322 = vpop.f32.mrf.mxu0
      %v323 = vadd.f32 0.0, %v322
      %v324 = vpop.f32.mrf.mxu0
      %v325 = vpop.f32.mrf.mxu0
      %v326 = vadd.f32 0.0, %v325
      %v327 = vpop.f32.mrf.mxu0
      %328 = vmatprep.mubr.bf16.mxu0 0
      %329 = vmatmul.mubr.bf16.gmra.mxu0 %v253
      %v330 = vpop.f32.mrf.mxu0
      %v331 = vadd.f32 0.0, %v330
      %v332 = vpop.f32.mrf.mxu0
      %v333 = vpop.f32.mrf.mxu0
      %v334 = vadd.f32 0.0, %v333
      %v335 = vpop.f32.mrf.mxu0
      %336 = vmatprep.mubr.bf16.mxu0 0
      %337 = vmatmul.mubr.bf16.gmra.mxu0 %v256
      %v338 = vpop.f32.mrf.mxu0
      %v339 = vadd.f32 0.0, %v338
      %v340 = vpop.f32.mrf.mxu0
      %v341 = vpop.f32.mrf.mxu0
      %v342 = vadd.f32 0.0, %v341
      %v343 = vpop.f32.mrf.mxu0
      %344 = vmatprep.mubr.bf16.mxu0 0
      %345 = vmatmul.mubr.bf16.gmra.mxu0 %v259
      %v346 = vpop.f32.mrf.mxu0
      %v347 = vadd.f32 0.0, %v346
      %v348 = vpop.f32.mrf.mxu0
      %v349 = vpop.f32.mrf.mxu0
      %v350 = vadd.f32 0.0, %v349
      %v351 = vpop.f32.mrf.mxu0
      %352 = vmatprep.mubr.bf16.mxu0 0
      %353 = vmatmul.mubr.bf16.gmra.mxu0 %v262
      %v354 = vpop.f32.mrf.mxu0
      %v355 = vadd.f32 0.0, %v354
      %v356 = vpop.f32.mrf.mxu0
      %v357 = vpop.f32.mrf.mxu0
      %v358 = vadd.f32 0.0, %v357
      %v359 = vpop.f32.mrf.mxu0
      %360 = vdwg.mxu0
      %v361 = vld [vmem:[%s3] sm:$0x1]
      %v362 = vlaneseq
      %v363 = vshrl.u32 %v362, 7
      %v364 = vsub.s32 0, %v363
      %v365 = vrot.slane %v361, %v364
      %v366 = vmul.f32 %v299, %v365
      %v367 = vmul.f32 %v302, %v365
      %v368 = vmul.f32 %v307, %v365
      %v369 = vmul.f32 %v310, %v365
      %v370 = vmul.f32 %v315, %v365
      %v371 = vmul.f32 %v318, %v365
      %v372 = vmul.f32 %v323, %v365
      %v373 = vmul.f32 %v326, %v365
      %v374 = vmul.f32 %v331, %v365
      %v375 = vmul.f32 %v334, %v365
      %v376 = vmul.f32 %v339, %v365
      %v377 = vmul.f32 %v342, %v365
      %v378 = vmul.f32 %v347, %v365
      %v379 = vmul.f32 %v350, %v365
      %v380 = vmul.f32 %v355, %v365
      %v381 = vmul.f32 %v358, %v365
      %v382 = vld [vmem:[%s3 + $0x1] sm:$0x1]
      %v383 = vlaneseq
      %v384 = vshrl.u32 %v383, 7
      %v385 = vsub.s32 0, %v384
      %v386 = vrot.slane %v382, %v385
      %v387 = vadd.f32 %v366, %v386
      %v388 = vadd.f32 %v367, %v386
      %v389 = vadd.f32 %v368, %v386
      %v390 = vadd.f32 %v369, %v386
      %v391 = vadd.f32 %v370, %v386
      %v392 = vadd.f32 %v371, %v386
      %v393 = vadd.f32 %v372, %v386
      %v394 = vadd.f32 %v373, %v386
      %v395 = vadd.f32 %v374, %v386
      %v396 = vadd.f32 %v375, %v386
      %v397 = vadd.f32 %v376, %v386
      %v398 = vadd.f32 %v377, %v386
      %v399 = vadd.f32 %v378, %v386
      %v400 = vadd.f32 %v379, %v386
      %v401 = vadd.f32 %v380, %v386
      %v402 = vadd.f32 %v381, %v386
      %v403 = vmax.f32 %v387, 0.0
      %v404 = vmax.f32 %v388, 0.0
      %v405 = vmax.f32 %v389, 0.0
      %v406 = vmax.f32 %v390, 0.0
      %v407 = vmax.f32 %v391, 0.0
      %v408 = vmax.f32 %v392, 0.0
      %v409 = vmax.f32 %v393, 0.0
      %v410 = vmax.f32 %v394, 0.0
      %v411 = vmax.f32 %v395, 0.0
      %v412 = vmax.f32 %v396, 0.0
      %v413 = vmax.f32 %v397, 0.0
      %v414 = vmax.f32 %v398, 0.0
      %v415 = vmax.f32 %v399, 0.0
      %v416 = vmax.f32 %v400, 0.0
      %v417 = vmax.f32 %v401, 0.0
      %v418 = vmax.f32 %v402, 0.0
      %v419 = vpack.c.bf16 %v404, %v403
      %v420 = vpack.c.bf16 %v406, %v405
      %v421 = vpack.c.bf16 %v408, %v407
      %v422 = vpack.c.bf16 %v410, %v409
      %v423 = vpack.c.bf16 %v412, %v411
      %v424 = vpack.c.bf16 %v414, %v413
      %v425 = vpack.c.bf16 %v416, %v415
      %v426 = vpack.c.bf16 %v418, %v417
      %v427 = vld [vmem:[%s2] sm:$0xf]
      %v428 = vld [vmem:[%s2 + $0x4] sm:$0xf]
      %v429 = vld [vmem:[%s2 + $0x8] sm:$0xf]
      %v430 = vld [vmem:[%s2 + $0xc] sm:$0xf]
      %v431 = vld [vmem:[%s2 + $0x10] sm:$0xf]
      %v432 = vld [vmem:[%s2 + $0x14] sm:$0xf]
      %v433 = vld [vmem:[%s2 + $0x18] sm:$0xf]
      %v434 = vld [vmem:[%s2 + $0x1c] sm:$0xf]
      %v443 = vunpack.c.l.b16 %v427
      %v444 = vunpack.c.l.b16 %v428
      %v445 = vunpack.c.l.b16 %v429
      %v446 = vunpack.c.l.b16 %v430
      %v447 = vunpack.c.l.b16 %v431
      %v448 = vunpack.c.l.b16 %v432
      %v449 = vunpack.c.l.b16 %v433
      %v450 = vunpack.c.l.b16 %v434
      %v451 = vpack.c.b16 %v444, %v443
      %v452 = vpack.c.b16 %v446, %v445
      %v453 = vpack.c.b16 %v448, %v447
      %v454 = vpack.c.b16 %v450, %v449
      %vm459 = vcmask 523264
      %v461 = vsel %vm459, %v419, 0
      %v464 = vsel %vm459, %v420, 0
      %v467 = vsel %vm459, %v421, 0
      %v470 = vsel %vm459, %v422, 0
      %v473 = vsel %vm459, %v423, 0
      %v476 = vsel %vm459, %v424, 0
      %v479 = vsel %vm459, %v425, 0
      %v482 = vsel %vm459, %v426, 0
      %484 = vmatprep.subr.bf16.mxu0 0
      %485 = vmatpush1.bf16.msra.mxu0 0
      %486 = vmatprep.subr.bf16.mxu0 0
      %487 = vmatpush1.bf16.msra.mxu0 0
      %488 = vmatprep.subr.bf16.mxu0 0
      %489 = vmatpush1.bf16.msra.mxu0 0
      %490 = vmatprep.subr.bf16.mxu0 0
      %491 = vmatpush1.bf16.msra.mxu0 0
      %492 = vmatprep.subr.bf16.mxu0 0
      %493 = vmatpush1.bf16.msra.mxu0 %v454
      %494 = vmatprep.subr.bf16.mxu0 0
      %495 = vmatpush1.bf16.msra.mxu0 %v453
      %496 = vmatprep.subr.bf16.mxu0 0
      %497 = vmatpush1.bf16.msra.mxu0 %v452
      %498 = vmatprep.subr.bf16.mxu0 0
      %499 = vmatpush1.bf16.msra.mxu0 %v451
      %500 = vmatprep.subr.bf16.mxu0 0
      %501 = vmatpush2.bf16.msra.mxu0 0
      %502 = vmatprep.subr.bf16.mxu0 0
      %503 = vmatpush2.bf16.msra.mxu0 0
      %504 = vmatprep.subr.bf16.mxu0 0
      %505 = vmatpush2.bf16.msra.mxu0 0
      %506 = vmatprep.subr.bf16.mxu0 0
      %507 = vmatpush2.bf16.msra.mxu0 0
      %508 = vmatprep.subr.bf16.mxu0 0
      %509 = vmatpush2.bf16.msra.mxu0 0
      %510 = vmatprep.subr.bf16.mxu0 0
      %511 = vmatpush2.bf16.msra.mxu0 0
      %512 = vmatprep.subr.bf16.mxu0 0
      %513 = vmatpush2.bf16.msra.mxu0 0
      %514 = vmatprep.subr.bf16.mxu0 0
      %515 = vmatpush2.bf16.msra.mxu0 0
      %516 = vmatprep.mubr.bf16.mxu0 0
      %517 = vmatmul.mubr.bf16.gmra.mxu0 %v461
      %v518 = vpop.f32.mrf.mxu0
      %v519 = vadd.f32 0.0, %v518
      %v520 = vpop.f32.mrf.mxu0
      %v521 = vpop.f32.mrf.mxu0
      %v522 = vadd.f32 0.0, %v521
      %v523 = vpop.f32.mrf.mxu0
      %524 = vmatprep.mubr.bf16.mxu0 0
      %525 = vmatmul.mubr.bf16.gmra.mxu0 %v464
      %v526 = vpop.f32.mrf.mxu0
      %v527 = vadd.f32 0.0, %v526
      %v528 = vpop.f32.mrf.mxu0
      %v529 = vpop.f32.mrf.mxu0
      %v530 = vadd.f32 0.0, %v529
      %v531 = vpop.f32.mrf.mxu0
      %532 = vmatprep.mubr.bf16.mxu0 0
      %533 = vmatmul.mubr.bf16.gmra.mxu0 %v467
      %v534 = vpop.f32.mrf.mxu0
      %v535 = vadd.f32 0.0, %v534
      %v536 = vpop.f32.mrf.mxu0
      %v537 = vpop.f32.mrf.mxu0
      %v538 = vadd.f32 0.0, %v537
      %v539 = vpop.f32.mrf.mxu0
      %540 = vmatprep.mubr.bf16.mxu0 0
      %541 = vmatmul.mubr.bf16.gmra.mxu0 %v470
      %v542 = vpop.f32.mrf.mxu0
      %v543 = vadd.f32 0.0, %v542
      %v544 = vpop.f32.mrf.mxu0
      %v545 = vpop.f32.mrf.mxu0
      %v546 = vadd.f32 0.0, %v545
      %v547 = vpop.f32.mrf.mxu0
      %548 = vmatprep.mubr.bf16.mxu0 0
      %549 = vmatmul.mubr.bf16.gmra.mxu0 %v473
      %v550 = vpop.f32.mrf.mxu0
      %v551 = vadd.f32 0.0, %v550
      %v552 = vpop.f32.mrf.mxu0
      %v553 = vpop.f32.mrf.mxu0
      %v554 = vadd.f32 0.0, %v553
      %v555 = vpop.f32.mrf.mxu0
      %556 = vmatprep.mubr.bf16.mxu0 0
      %557 = vmatmul.mubr.bf16.gmra.mxu0 %v476
      %v558 = vpop.f32.mrf.mxu0
      %v559 = vadd.f32 0.0, %v558
      %v560 = vpop.f32.mrf.mxu0
      %v561 = vpop.f32.mrf.mxu0
      %v562 = vadd.f32 0.0, %v561
      %v563 = vpop.f32.mrf.mxu0
      %564 = vmatprep.mubr.bf16.mxu0 0
      %565 = vmatmul.mubr.bf16.gmra.mxu0 %v479
      %v566 = vpop.f32.mrf.mxu0
      %v567 = vadd.f32 0.0, %v566
      %v568 = vpop.f32.mrf.mxu0
      %v569 = vpop.f32.mrf.mxu0
      %v570 = vadd.f32 0.0, %v569
      %v571 = vpop.f32.mrf.mxu0
      %572 = vmatprep.mubr.bf16.mxu0 0
      %573 = vmatmul.mubr.bf16.gmra.mxu0 %v482
      %v574 = vpop.f32.mrf.mxu0
      %v575 = vadd.f32 0.0, %v574
      %v576 = vpop.f32.mrf.mxu0
      %v577 = vpop.f32.mrf.mxu0
      %v578 = vadd.f32 0.0, %v577
      %v579 = vpop.f32.mrf.mxu0
      %580 = vdwg.mxu0
      %v581 = vsel %vm239, %v519, 0.0
      %v582 = vsel %vm239, %v522, 0.0
      %v583 = vadd.f32 %v581, %v582
      %v584 = vsel %vm239, %v527, 0.0
      %v585 = vadd.f32 %v583, %v584
      %v586 = vsel %vm239, %v530, 0.0
      %v587 = vadd.f32 %v585, %v586
      %v588 = vsel %vm239, %v535, 0.0
      %v589 = vadd.f32 %v587, %v588
      %v590 = vsel %vm239, %v538, 0.0
      %v591 = vadd.f32 %v589, %v590
      %v592 = vsel %vm239, %v543, 0.0
      %v593 = vadd.f32 %v591, %v592
      %v594 = vsel %vm239, %v546, 0.0
      %v595 = vadd.f32 %v593, %v594
      %v596 = vsel %vm239, %v551, 0.0
      %v597 = vadd.f32 %v595, %v596
      %v598 = vsel %vm239, %v554, 0.0
      %v599 = vadd.f32 %v597, %v598
      %v600 = vsel %vm239, %v559, 0.0
      %v601 = vadd.f32 %v599, %v600
      %v602 = vsel %vm239, %v562, 0.0
      %v603 = vadd.f32 %v601, %v602
      %v604 = vsel %vm239, %v567, 0.0
      %v605 = vadd.f32 %v603, %v604
      %v606 = vsel %vm239, %v570, 0.0
      %v607 = vadd.f32 %v605, %v606
      %v608 = vsel %vm239, %v575, 0.0
      %v609 = vadd.f32 %v607, %v608
      %v610 = vsel %vm239, %v578, 0.0
      %v611 = vadd.f32 %v609, %v610
      %v612 = vrot.slane %v611, 4
      %v613 = vadd.f32 %v611, %v612
      %v614 = vrot.slane %v613, 2
      %v615 = vadd.f32 %v613, %v614
      %v616 = vrot.slane %v615, 1
      %v617 = vadd.f32 %v615, %v616
      %vm618 = vcmask 253952
      %619 = vst.msk [vmem:[%s197] sm:$0x1] %vm618, %v617
      %v620 = vmul.f32 %v519, %v519
      %v621 = vmul.f32 %v522, %v522
      %v622 = vmul.f32 %v527, %v527
      %v623 = vmul.f32 %v530, %v530
      %v624 = vmul.f32 %v535, %v535
      %v625 = vmul.f32 %v538, %v538
      %v626 = vmul.f32 %v543, %v543
      %v627 = vmul.f32 %v546, %v546
      %v628 = vmul.f32 %v551, %v551
      %v629 = vmul.f32 %v554, %v554
      %v630 = vmul.f32 %v559, %v559
      %v631 = vmul.f32 %v562, %v562
      %v632 = vmul.f32 %v567, %v567
      %v633 = vmul.f32 %v570, %v570
      %v634 = vmul.f32 %v575, %v575
      %v635 = vmul.f32 %v578, %v578
      %v636 = vsel %vm239, %v620, 0.0
      %v637 = vsel %vm239, %v621, 0.0
      %v638 = vadd.f32 %v636, %v637
      %v639 = vsel %vm239, %v622, 0.0
      %v640 = vadd.f32 %v638, %v639
      %v641 = vsel %vm239, %v623, 0.0
      %v642 = vadd.f32 %v640, %v641
      %v643 = vsel %vm239, %v624, 0.0
      %v644 = vadd.f32 %v642, %v643
      %v645 = vsel %vm239, %v625, 0.0
      %v646 = vadd.f32 %v644, %v645
      %v647 = vsel %vm239, %v626, 0.0
      %v648 = vadd.f32 %v646, %v647
      %v649 = vsel %vm239, %v627, 0.0
      %v650 = vadd.f32 %v648, %v649
      %v651 = vsel %vm239, %v628, 0.0
      %v652 = vadd.f32 %v650, %v651
      %v653 = vsel %vm239, %v629, 0.0
      %v654 = vadd.f32 %v652, %v653
      %v655 = vsel %vm239, %v630, 0.0
      %v656 = vadd.f32 %v654, %v655
      %v657 = vsel %vm239, %v631, 0.0
      %v658 = vadd.f32 %v656, %v657
      %v659 = vsel %vm239, %v632, 0.0
      %v660 = vadd.f32 %v658, %v659
      %v661 = vsel %vm239, %v633, 0.0
      %v662 = vadd.f32 %v660, %v661
      %v663 = vsel %vm239, %v634, 0.0
      %v664 = vadd.f32 %v662, %v663
      %v665 = vsel %vm239, %v635, 0.0
      %v666 = vadd.f32 %v664, %v665
      %v667 = vrot.slane %v666, 4
      %v668 = vadd.f32 %v666, %v667
      %v669 = vrot.slane %v668, 2
      %v670 = vadd.f32 %v668, %v669
      %v671 = vrot.slane %v670, 1
      %v672 = vadd.f32 %v670, %v671
      %673 = vst.msk [vmem:[%s197 + $0x1] sm:$0x1] %vm618, %v672
      %p674 = scmp.lt.s32.totalorder %s15, 1
      %s675 = scalar_select %p674, %s15, 1
      %s676 = smul.addr %s675, 2
      %s677 = scalar_lea.vmem %s4, %s676
      // Predicated region
      $region37: #{fully_connected_layer.4} parent=35 // pred_check
        %p678 = pneg %p122
      $region38: #{fully_connected_layer.4} parent=35 // pred_check_branch
        %680 = sbr.rel (%p678) target = $region40
      $region39: #{fully_connected_layer.4} parent=35 // pred_region
        _
      $region40: #{fully_connected_layer.4} parent=35 // pred_fallthru
        _
    $region36: #{fully_connected_layer.4} parent=5 // pred_fallthru
      _
    %p681 = scmp.le.s32.totalorder 2, %s10
    // Predicated region
    $region41: #{fully_connected_layer.4} parent=5 // pred_check
      %p682 = pneg %p681
    $region42: #{fully_connected_layer.4} parent=5 // pred_check_branch
      %684 = sbr.rel (%p682) target = $region44
    $region43: #{fully_connected_layer.4} parent=5 // pred_region
      %s685 = ssub.s32 %s10, 2
      // Predicated region
      $region45: #{fully_connected_layer.4} parent=43 // pred_check
        %p686 = pneg %p128
      $region46: #{fully_connected_layer.4} parent=43 // pred_check_branch
        %688 = sbr.rel (%p686) target = $region48
      $region47: #{fully_connected_layer.4} parent=43 // pred_region
        %p689 = scmp.lt.s32.totalorder %s16, 1
        %s690 = scalar_select %p689, %s16, 1
        %s691 = smul.addr %s690, 2
        %s692 = scalar_lea.vmem %s4, %s691
      $region48: #{fully_connected_layer.4} parent=43 // pred_fallthru
        _
    $region44: #{fully_connected_layer.4} parent=5 // pred_fallthru
      _
  $region6: #{fully_connected_layer.4} parent=0 // loop_footer
    %s14 = sadd.s32 1, %s10
  $region7: #{fully_connected_layer.4} parent=0 // loop_footer_branch
    %9 = sbr.rel target = $region3
  $region8: #{fully_connected_layer.4} parent=0 // loop_exit
    _

// kernel: fully_connected_layer.5
$region0: #{fully_connected_layer.5}
  #allocation0 [shape = 'u32[]', space=smem, size = 0x4, offset = 0x4, fixed_abs, tag = 'smem constant byte address 0x4 - core index']
  #allocation1 [shape = 'u32[144,128]{1,0:T(1,128)}', space=vmem, size = 0x12000, scoped, tag = 'internal scratch']
  %s0 = inlined_call_operand.vmem [shape: f32[32,256], index: 0, kind: input, shape index: {}]
  %s1 = inlined_call_operand.vmem [shape: bf16[256,512], index: 1, kind: input, shape index: {}]
  %s2 = inlined_call_operand.vmem [shape: bf16[512,256], index: 2, kind: input, shape index: {}]
  %s3 = inlined_call_operand.vmem [shape: bf16[256,128], index: 3, kind: input, shape index: {}]
  %s4 = inlined_call_operand.vmem [shape: f32[8,512], index: 4, kind: input, shape index: {}]
  %s5 = inlined_call_operand.vmem [shape: f32[32,128], index: 5, kind: output, shape index: {}]
  %s6 = sld [smem:[#allocation0]]
  $region53: #{fully_connected_layer.5} parent=0
    _
  %s8 = ssub.s32 1, %s6
  %s9 = scalar_select 0, %s8, %s6
  loop: start=0, step=1, limit=4
  $region2: #{fully_connected_layer.5} parent=0 // loop_pre_header
    _
  $region3: #{fully_connected_layer.5} parent=0 // loop_header
    %s11 = sphi 0, %s15
    %p12 = scmp.ge.s32.totalorder %s11, 4
    %s21 = sphi 0, %s23
    %s24 = sphi 0, %s21
    %s25 = sphi 0, %s24
    %s41 = sphi 0, %s25
    %s45 = sphi 0, %s45
    %s47 = sphi 0, %s45
    %s48 = sphi 0, %s47
    %s62 = sphi 0, %s48
    %s66 = sphi 0, %s66
    %s68 = sphi 0, %s66
    %s69 = sphi 0, %s68
    %s83 = sphi 0, %s69
    %s87 = sphi 0, %s87
    %s89 = sphi 0, %s87
    %s90 = sphi 0, %s89
    %s104 = sphi 0, %s90
    %s108 = sphi 0, %s108
    %s110 = sphi 0, %s108
    %s111 = sphi 0, %s110
    %s125 = sphi 0, %s111
    %s131 = sphi 0, %s133
    %s134 = sphi 0, %s131
    %s135 = sphi 0, %s134
    %s151 = sphi 0, %s135
  $region4: #{fully_connected_layer.5} parent=0 // loop_header_branch
    %14 = sbr.rel (%p12) target = $region8
  $region5: #{fully_connected_layer.5} parent=0 // loop_body
    %s16 = ssub.s32 %s11, 1
    %s17 = ssub.s32 %s11, 2
    %s18 = sadd.s32 %s11, 1
    %s19 = ssub.s32 %s11, %s18
    %p20 = scmp.eq.s32.totalorder %s19, 0
    %s22 = sadd.s32 %s21, 1
    %s23 = scalar_select %p20, %s21, %s22
    %p26 = pneg %p20
    %p27 = scmp.eq.s32.totalorder %s11, 1
    %p28 = por %p26, %p27
    %p29 = scmp.ne.s32.totalorder %s21, %s24
    %p30 = scmp.eq.s32.totalorder %s11, 0
    %p31 = por %p29, %p30
    %p32 = scmp.ne.s32.totalorder %s21, %s24
    %p33 = scmp.eq.s32.totalorder %s16, 1
    %p34 = por %p32, %p33
    %p35 = scmp.ne.s32.totalorder %s24, %s25
    %p36 = scmp.eq.s32.totalorder %s16, 0
    %p37 = por %p35, %p36
    %p38 = scmp.ne.s32.totalorder %s24, %s25
    %p39 = scmp.eq.s32.totalorder %s17, 1
    %p40 = por %p38, %p39
    %p42 = scmp.ne.s32.totalorder %s25, %s41
    %p43 = scmp.eq.s32.totalorder %s17, 0
    %p44 = por %p42, %p43
    %s46 = sadd.s32 %s45, 1
    %p49 = scmp.eq.s32.totalorder %s11, 1
    %p50 = scmp.ne.s32.totalorder %s45, %s47
    %p51 = scmp.eq.s32.totalorder %s11, 0
    %p52 = por %p50, %p51
    %p53 = scmp.ne.s32.totalorder %s45, %s47
    %p54 = scmp.eq.s32.totalorder %s16, 1
    %p55 = por %p53, %p54
    %p56 = scmp.ne.s32.totalorder %s47, %s48
    %p57 = scmp.eq.s32.totalorder %s16, 0
    %p58 = por %p56, %p57
    %p59 = scmp.ne.s32.totalorder %s47, %s48
    %p60 = scmp.eq.s32.totalorder %s17, 1
    %p61 = por %p59, %p60
    %p63 = scmp.ne.s32.totalorder %s48, %s62
    %p64 = scmp.eq.s32.totalorder %s17, 0
    %p65 = por %p63, %p64
    %s67 = sadd.s32 %s66, 1
    %p70 = scmp.eq.s32.totalorder %s11, 1
    %p71 = scmp.ne.s32.totalorder %s66, %s68
    %p72 = scmp.eq.s32.totalorder %s11, 0
    %p73 = por %p71, %p72
    %p74 = scmp.ne.s32.totalorder %s66, %s68
    %p75 = scmp.eq.s32.totalorder %s16, 1
    %p76 = por %p74, %p75
    %p77 = scmp.ne.s32.totalorder %s68, %s69
    %p78 = scmp.eq.s32.totalorder %s16, 0
    %p79 = por %p77, %p78
    %p80 = scmp.ne.s32.totalorder %s68, %s69
    %p81 = scmp.eq.s32.totalorder %s17, 1
    %p82 = por %p80, %p81
    %p84 = scmp.ne.s32.totalorder %s69, %s83
    %p85 = scmp.eq.s32.totalorder %s17, 0
    %p86 = por %p84, %p85
    %s88 = sadd.s32 %s87, 1
    %p91 = scmp.eq.s32.totalorder %s11, 1
    %p92 = scmp.ne.s32.totalorder %s87, %s89
    %p93 = scmp.eq.s32.totalorder %s11, 0
    %p94 = por %p92, %p93
    %p95 = scmp.ne.s32.totalorder %s87, %s89
    %p96 = scmp.eq.s32.totalorder %s16, 1
    %p97 = por %p95, %p96
    %p98 = scmp.ne.s32.totalorder %s89, %s90
    %p99 = scmp.eq.s32.totalorder %s16, 0
    %p100 = por %p98, %p99
    %p101 = scmp.ne.s32.totalorder %s89, %s90
    %p102 = scmp.eq.s32.totalorder %s17, 1
    %p103 = por %p101, %p102
    %p105 = scmp.ne.s32.totalorder %s90, %s104
    %p106 = scmp.eq.s32.totalorder %s17, 0
    %p107 = por %p105, %p106
    %s109 = sadd.s32 %s108, 1
    %p112 = scmp.eq.s32.totalorder %s11, 1
    %p113 = scmp.ne.s32.totalorder %s108, %s110
    %p114 = scmp.eq.s32.totalorder %s11, 0
    %p115 = por %p113, %p114
    %p116 = scmp.ne.s32.totalorder %s108, %s110
    %p117 = scmp.eq.s32.totalorder %s16, 1
    %p118 = por %p116, %p117
    %p119 = scmp.ne.s32.totalorder %s110, %s111
    %p120 = scmp.eq.s32.totalorder %s16, 0
    %p121 = por %p119, %p120
    %p122 = scmp.ne.s32.totalorder %s110, %s111
    %p123 = scmp.eq.s32.totalorder %s17, 1
    %p124 = por %p122, %p123
    %p126 = scmp.ne.s32.totalorder %s111, %s125
    %p127 = scmp.eq.s32.totalorder %s17, 0
    %p128 = por %p126, %p127
    %s129 = ssub.s32 %s11, %s18
    %p130 = scmp.eq.s32.totalorder %s129, 0
    %s132 = sadd.s32 %s131, 1
    %s133 = scalar_select %p130, %s131, %s132
    %p136 = pneg %p130
    %p137 = scmp.eq.s32.totalorder %s11, 1
    %p138 = por %p136, %p137
    %p139 = scmp.ne.s32.totalorder %s131, %s134
    %p140 = scmp.eq.s32.totalorder %s11, 0
    %p141 = por %p139, %p140
    %p142 = scmp.ne.s32.totalorder %s131, %s134
    %p143 = scmp.eq.s32.totalorder %s16, 1
    %p144 = por %p142, %p143
    %p145 = scmp.ne.s32.totalorder %s134, %s135
    %p146 = scmp.eq.s32.totalorder %s16, 0
    %p147 = por %p145, %p146
    %p148 = scmp.ne.s32.totalorder %s134, %s135
    %p149 = scmp.eq.s32.totalorder %s17, 1
    %p150 = por %p148, %p149
    %p152 = scmp.ne.s32.totalorder %s135, %s151
    %p153 = scmp.eq.s32.totalorder %s17, 0
    %p154 = por %p152, %p153
    %p155 = scmp.le.s32.totalorder 1, %s11
    %p156 = scmp.lt.s32.totalorder %s11, 3
    %p157 = pnand %p155, %p156
    %p158 = pneg %p157
    // Predicated region
    $region9: #{fully_connected_layer.5} parent=5 // pred_check
      _
    $region10: #{fully_connected_layer.5} parent=5 // pred_check_branch
      %160 = sbr.rel (%p157) target = $region12
    $region11: #{fully_connected_layer.5} parent=5 // pred_region
      %s161 = ssub.s32 %s11, 1
      // Predicated region
      $region13: #{fully_connected_layer.5} parent=11 // pred_check
        %p162 = pneg %p58
      $region14: #{fully_connected_layer.5} parent=11 // pred_check_branch
        %164 = sbr.rel (%p162) target = $region16
      $region15: #{fully_connected_layer.5} parent=11 // pred_region
        _
      $region16: #{fully_connected_layer.5} parent=11 // pred_fallthru
        _
      // Predicated region
      $region17: #{fully_connected_layer.5} parent=11 // pred_check
        %p165 = pneg %p79
      $region18: #{fully_connected_layer.5} parent=11 // pred_check_branch
        %167 = sbr.rel (%p165) target = $region20
      $region19: #{fully_connected_layer.5} parent=11 // pred_region
        _
      $region20: #{fully_connected_layer.5} parent=11 // pred_fallthru
        _
      // Predicated region
      $region21: #{fully_connected_layer.5} parent=11 // pred_check
        %p168 = pneg %p100
      $region22: #{fully_connected_layer.5} parent=11 // pred_check_branch
        %170 = sbr.rel (%p168) target = $region24
      $region23: #{fully_connected_layer.5} parent=11 // pred_region
        _
      $region24: #{fully_connected_layer.5} parent=11 // pred_fallthru
        _
      // Predicated region
      $region25: #{fully_connected_layer.5} parent=11 // pred_check
        %p171 = pneg %p121
      $region26: #{fully_connected_layer.5} parent=11 // pred_check_branch
        %173 = sbr.rel (%p171) target = $region28
      $region27: #{fully_connected_layer.5} parent=11 // pred_region
        _
      $region28: #{fully_connected_layer.5} parent=11 // pred_fallthru
        _
    $region12: #{fully_connected_layer.5} parent=5 // pred_fallthru
      _
    %p174 = scmp.lt.s32.totalorder %s11, 2
    // Predicated region
    $region29: #{fully_connected_layer.5} parent=5 // pred_check
      %p175 = pneg %p174
    $region30: #{fully_connected_layer.5} parent=5 // pred_check_branch
      %177 = sbr.rel (%p175) target = $region32
    $region31: #{fully_connected_layer.5} parent=5 // pred_region
      // Predicated region
      $region33: #{fully_connected_layer.5} parent=31 // pred_check
        %p178 = pneg %p31
      $region34: #{fully_connected_layer.5} parent=31 // pred_check_branch
        %180 = sbr.rel (%p178) target = $region36
      $region35: #{fully_connected_layer.5} parent=31 // pred_region
        %s181 = smul.u32 2, %s11
        %p182 = scmp.lt.s32.totalorder %s181, 3
        %s183 = scalar_select %p182, %s181, 3
        %s184 = smul.addr %s183, 2
        %s185 = smul.addr %s184, 8
        %s186 = scalar_lea.vmem %s0, %s185
        %s187 = smul.u32 2, %s11
      $region36: #{fully_connected_layer.5} parent=31 // pred_fallthru
        _
    $region32: #{fully_connected_layer.5} parent=5 // pred_fallthru
      _
    %p188 = scmp.le.s32.totalorder 1, %s11
    %p189 = scmp.lt.s32.totalorder %s11, 3
    %p190 = pnand %p188, %p189
    %p191 = pneg %p190
    // Predicated region
    $region37: #{fully_connected_layer.5} parent=5 // pred_check
      _
    $region38: #{fully_connected_layer.5} parent=5 // pred_check_branch
      %193 = sbr.rel (%p190) target = $region40
    $region39: #{fully_connected_layer.5} parent=5 // pred_region
      %s194 = ssub.s32 %s11, 1
      %s195 = smul.u32 2, %s16
      %p196 = scmp.lt.s32.totalorder %s195, 3
      %s197 = scalar_select %p196, %s195, 3
      %s198 = smul.addr %s197, 2
      %s199 = smul.addr %s198, 8
      %s200 = scalar_lea.vmem %s0, %s199
      %p201 = pneg %p37
      %p202 = pneg %p34
      %p203 = pneg %p58
      %p204 = pneg %p55
      %p205 = pneg %p79
      %p206 = pneg %p76
      %p207 = pneg %p100
      %p208 = pneg %p97
      %p209 = pneg %p121
      %p210 = pneg %p118
      %p211 = pneg %p147
      %p212 = pneg %p144
      %s213 = smul.u32 2, %s16
      %p214 = scmp.lt.s32.totalorder %s213, 3
      %s215 = scalar_select %p214, %s213, 3
      %s216 = smul.addr %s215, 8
      %s217 = scalar_lea.vmem %s5, %s216
      %s218 = smul.u32 2, %s16
      %p219 = scmp.lt.s32.totalorder %s218, 3
      %s220 = scalar_select %p219, %s218, 3
      %s221 = smul.addr %s220, 2
      %s222 = smul.addr %s221, 8
      %s223 = scalar_lea.vmem %s0, %s222
      %s224 = smul.u32 2, %s16
      %s225 = smul.u32 2, %s16
      %p226 = scmp.lt.s32.totalorder %s225, 3
      %s227 = scalar_select %p226, %s225, 3
      %s228 = smul.addr %s227, 8
      %s229 = scalar_lea.vmem %s5, %s228
      %s230 = smul.u32 2, %s16
      %v232 = vld [vmem:[%s223] sm:$0xff]
      %v233 = vld [vmem:[%s223 + $0x8] sm:$0xff]
      %v234 = vld [vmem:[%s223 + $0x10] sm:$0xff]
      %v235 = vld [vmem:[%s223 + $0x18] sm:$0xff]
      %v236 = vpack.c.bf16 %v234, %v232
      %v237 = vpack.c.bf16 %v235, %v233
      %v238 = vld [vmem:[%s1] sm:$0xff]
      %v239 = vld [vmem:[%s1 + $0x8] sm:$0xff]
      %v240 = vld [vmem:[%s1 + $0x10] sm:$0xff]
      %v241 = vld [vmem:[%s1 + $0x18] sm:$0xff]
      %v242 = vld [vmem:[%s1 + $0x20] sm:$0xff]
      %v243 = vld [vmem:[%s1 + $0x28] sm:$0xff]
      %v244 = vld [vmem:[%s1 + $0x30] sm:$0xff]
      %v245 = vld [vmem:[%s1 + $0x38] sm:$0xff]
      %v246 = vld [vmem:[%s1 + $0x40] sm:$0xff]
      %v247 = vld [vmem:[%s1 + $0x48] sm:$0xff]
      %v248 = vld [vmem:[%s1 + $0x50] sm:$0xff]
      %v249 = vld [vmem:[%s1 + $0x58] sm:$0xff]
      %v250 = vld [vmem:[%s1 + $0x60] sm:$0xff]
      %v251 = vld [vmem:[%s1 + $0x68] sm:$0xff]
      %v252 = vld [vmem:[%s1 + $0x70] sm:$0xff]
      %v253 = vld [vmem:[%s1 + $0x78] sm:$0xff]
      %v254 = vld [vmem:[%s1 + $0x80] sm:$0xff]
      %v255 = vld [vmem:[%s1 + $0x88] sm:$0xff]
      %v256 = vld [vmem:[%s1 + $0x90] sm:$0xff]
      %v257 = vld [vmem:[%s1 + $0x98] sm:$0xff]
      %v258 = vld [vmem:[%s1 + $0xa0] sm:$0xff]
      %v259 = vld [vmem:[%s1 + $0xa8] sm:$0xff]
      %v260 = vld [vmem:[%s1 + $0xb0] sm:$0xff]
      %v261 = vld [vmem:[%s1 + $0xb8] sm:$0xff]
      %v262 = vld [vmem:[%s1 + $0xc0] sm:$0xff]
      %v263 = vld [vmem:[%s1 + $0xc8] sm:$0xff]
      %v264 = vld [vmem:[%s1 + $0xd0] sm:$0xff]
      %v265 = vld [vmem:[%s1 + $0xd8] sm:$0xff]
      %v266 = vld [vmem:[%s1 + $0xe0] sm:$0xff]
      %v267 = vld [vmem:[%s1 + $0xe8] sm:$0xff]
      %v268 = vld [vmem:[%s1 + $0xf0] sm:$0xff]
      %v269 = vld [vmem:[%s1 + $0xf8] sm:$0xff]
      %v270 = vld [vmem:[%s1 + $0x100] sm:$0xff]
      %v271 = vld [vmem:[%s1 + $0x108] sm:$0xff]
      %v272 = vld [vmem:[%s1 + $0x110] sm:$0xff]
      %v273 = vld [vmem:[%s1 + $0x118] sm:$0xff]
      %v274 = vld [vmem:[%s1 + $0x120] sm:$0xff]
      %v275 = vld [vmem:[%s1 + $0x128] sm:$0xff]
      %v276 = vld [vmem:[%s1 + $0x130] sm:$0xff]
      %v277 = vld [vmem:[%s1 + $0x138] sm:$0xff]
      %v278 = vld [vmem:[%s1 + $0x140] sm:$0xff]
      %v279 = vld [vmem:[%s1 + $0x148] sm:$0xff]
      %v280 = vld [vmem:[%s1 + $0x150] sm:$0xff]
      %v281 = vld [vmem:[%s1 + $0x158] sm:$0xff]
      %v282 = vld [vmem:[%s1 + $0x160] sm:$0xff]
      %v283 = vld [vmem:[%s1 + $0x168] sm:$0xff]
      %v284 = vld [vmem:[%s1 + $0x170] sm:$0xff]
      %v285 = vld [vmem:[%s1 + $0x178] sm:$0xff]
      %v286 = vld [vmem:[%s1 + $0x180] sm:$0xff]
      %v287 = vld [vmem:[%s1 + $0x188] sm:$0xff]
      %v288 = vld [vmem:[%s1 + $0x190] sm:$0xff]
      %v289 = vld [vmem:[%s1 + $0x198] sm:$0xff]
      %v290 = vld [vmem:[%s1 + $0x1a0] sm:$0xff]
      %v291 = vld [vmem:[%s1 + $0x1a8] sm:$0xff]
      %v292 = vld [vmem:[%s1 + $0x1b0] sm:$0xff]
      %v293 = vld [vmem:[%s1 + $0x1b8] sm:$0xff]
      %v294 = vld [vmem:[%s1 + $0x1c0] sm:$0xff]
      %v295 = vld [vmem:[%s1 + $0x1c8] sm:$0xff]
      %v296 = vld [vmem:[%s1 + $0x1d0] sm:$0xff]
      %v297 = vld [vmem:[%s1 + $0x1d8] sm:$0xff]
      %v298 = vld [vmem:[%s1 + $0x1e0] sm:$0xff]
      %v299 = vld [vmem:[%s1 + $0x1e8] sm:$0xff]
      %v300 = vld [vmem:[%s1 + $0x1f0] sm:$0xff]
      %v301 = vld [vmem:[%s1 + $0x1f8] sm:$0xff]
      %v366 = vunpack.c.l.b16 %v238
      %v367 = vunpack.c.h.b16 %v238
      %v368 = vunpack.c.l.b16 %v239
      %v369 = vunpack.c.h.b16 %v239
      %v370 = vunpack.c.l.b16 %v240
      %v371 = vunpack.c.h.b16 %v240
      %v372 = vunpack.c.l.b16 %v241
      %v373 = vunpack.c.h.b16 %v241
      %v374 = vunpack.c.l.b16 %v242
      %v375 = vunpack.c.h.b16 %v242
      %v376 = vunpack.c.l.b16 %v243
      %v377 = vunpack.c.h.b16 %v243
      %v378 = vunpack.c.l.b16 %v244
      %v379 = vunpack.c.h.b16 %v244
      %v380 = vunpack.c.l.b16 %v245
      %v381 = vunpack.c.h.b16 %v245
      %v382 = vunpack.c.l.b16 %v246
      %v383 = vunpack.c.h.b16 %v246
      %v384 = vunpack.c.l.b16 %v247
      %v385 = vunpack.c.h.b16 %v247
      %v386 = vunpack.c.l.b16 %v248
      %v387 = vunpack.c.h.b16 %v248
      %v388 = vunpack.c.l.b16 %v249
      %v389 = vunpack.c.h.b16 %v249
      %v390 = vunpack.c.l.b16 %v250
      %v391 = vunpack.c.h.b16 %v250
      %v392 = vunpack.c.l.b16 %v251
      %v393 = vunpack.c.h.b16 %v251
      %v394 = vunpack.c.l.b16 %v252
      %v395 = vunpack.c.h.b16 %v252
      %v396 = vunpack.c.l.b16 %v253
      %v397 = vunpack.c.h.b16 %v253
      %v398 = vunpack.c.l.b16 %v254
      %v399 = vunpack.c.h.b16 %v254
      %v400 = vunpack.c.l.b16 %v255
      %v401 = vunpack.c.h.b16 %v255
      %v402 = vunpack.c.l.b16 %v256
      %v403 = vunpack.c.h.b16 %v256
      %v404 = vunpack.c.l.b16 %v257
      %v405 = vunpack.c.h.b16 %v257
      %v406 = vunpack.c.l.b16 %v258
      %v407 = vunpack.c.h.b16 %v258
      %v408 = vunpack.c.l.b16 %v259
      %v409 = vunpack.c.h.b16 %v259
      %v410 = vunpack.c.l.b16 %v260
      %v411 = vunpack.c.h.b16 %v260
      %v412 = vunpack.c.l.b16 %v261
      %v413 = vunpack.c.h.b16 %v261
      %v414 = vunpack.c.l.b16 %v262
      %v415 = vunpack.c.h.b16 %v262
      %v416 = vunpack.c.l.b16 %v263
      %v417 = vunpack.c.h.b16 %v263
      %v418 = vunpack.c.l.b16 %v264
      %v419 = vunpack.c.h.b16 %v264
      %v420 = vunpack.c.l.b16 %v265
      %v421 = vunpack.c.h.b16 %v265
      %v422 = vunpack.c.l.b16 %v266
      %v423 = vunpack.c.h.b16 %v266
      %v424 = vunpack.c.l.b16 %v267
      %v425 = vunpack.c.h.b16 %v267
      %v426 = vunpack.c.l.b16 %v268
      %v427 = vunpack.c.h.b16 %v268
      %v428 = vunpack.c.l.b16 %v269
      %v429 = vunpack.c.h.b16 %v269
      %v430 = vunpack.c.l.b16 %v270
      %v431 = vunpack.c.h.b16 %v270
      %v432 = vunpack.c.l.b16 %v271
      %v433 = vunpack.c.h.b16 %v271
      %v434 = vunpack.c.l.b16 %v272
      %v435 = vunpack.c.h.b16 %v272
      %v436 = vunpack.c.l.b16 %v273
      %v437 = vunpack.c.h.b16 %v273
      %v438 = vunpack.c.l.b16 %v274
      %v439 = vunpack.c.h.b16 %v274
      %v440 = vunpack.c.l.b16 %v275
      %v441 = vunpack.c.h.b16 %v275
      %v442 = vunpack.c.l.b16 %v276
      %v443 = vunpack.c.h.b16 %v276
      %v444 = vunpack.c.l.b16 %v277
      %v445 = vunpack.c.h.b16 %v277
      %v446 = vunpack.c.l.b16 %v278
      %v447 = vunpack.c.h.b16 %v278
      %v448 = vunpack.c.l.b16 %v279
      %v449 = vunpack.c.h.b16 %v279
      %v450 = vunpack.c.l.b16 %v280
      %v451 = vunpack.c.h.b16 %v280
      %v452 = vunpack.c.l.b16 %v281
      %v453 = vunpack.c.h.b16 %v281
      %v454 = vunpack.c.l.b16 %v282
      %v455 = vunpack.c.h.b16 %v282
      %v456 = vunpack.c.l.b16 %v283
      %v457 = vunpack.c.h.b16 %v283
      %v458 = vunpack.c.l.b16 %v284
      %v459 = vunpack.c.h.b16 %v284
      %v460 = vunpack.c.l.b16 %v285
      %v461 = vunpack.c.h.b16 %v285
      %v462 = vunpack.c.l.b16 %v286
      %v463 = vunpack.c.h.b16 %v286
      %v464 = vunpack.c.l.b16 %v287
      %v465 = vunpack.c.h.b16 %v287
      %v466 = vunpack.c.l.b16 %v288
      %v467 = vunpack.c.h.b16 %v288
      %v468 = vunpack.c.l.b16 %v289
      %v469 = vunpack.c.h.b16 %v289
      %v470 = vunpack.c.l.b16 %v290
      %v471 = vunpack.c.h.b16 %v290
      %v472 = vunpack.c.l.b16 %v291
      %v473 = vunpack.c.h.b16 %v291
      %v474 = vunpack.c.l.b16 %v292
      %v475 = vunpack.c.h.b16 %v292
      %v476 = vunpack.c.l.b16 %v293
      %v477 = vunpack.c.h.b16 %v293
      %v478 = vunpack.c.l.b16 %v294
      %v479 = vunpack.c.h.b16 %v294
      %v480 = vunpack.c.l.b16 %v295
      %v481 = vunpack.c.h.b16 %v295
      %v482 = vunpack.c.l.b16 %v296
      %v483 = vunpack.c.h.b16 %v296
      %v484 = vunpack.c.l.b16 %v297
      %v485 = vunpack.c.h.b16 %v297
      %v486 = vunpack.c.l.b16 %v298
      %v487 = vunpack.c.h.b16 %v298
      %v488 = vunpack.c.l.b16 %v299
      %v489 = vunpack.c.h.b16 %v299
      %v490 = vunpack.c.l.b16 %v300
      %v491 = vunpack.c.h.b16 %v300
      %v492 = vunpack.c.l.b16 %v301
      %v493 = vunpack.c.h.b16 %v301
      %v494 = vpack.c.b16 %v370, %v366
      %v495 = vpack.c.b16 %v371, %v367
      %v496 = vpack.c.b16 %v372, %v368
      %v497 = vpack.c.b16 %v373, %v369
      %v498 = vpack.c.b16 %v378, %v374
      %v499 = vpack.c.b16 %v379, %v375
      %v500 = vpack.c.b16 %v380, %v376
      %v501 = vpack.c.b16 %v381, %v377
      %v502 = vpack.c.b16 %v386, %v382
      %v503 = vpack.c.b16 %v387, %v383
      %v504 = vpack.c.b16 %v388, %v384
      %v505 = vpack.c.b16 %v389, %v385
      %v506 = vpack.c.b16 %v394, %v390
      %v507 = vpack.c.b16 %v395, %v391
      %v508 = vpack.c.b16 %v396, %v392
      %v509 = vpack.c.b16 %v397, %v393
      %v510 = vpack.c.b16 %v402, %v398
      %v511 = vpack.c.b16 %v403, %v399
      %v512 = vpack.c.b16 %v404, %v400
      %v513 = vpack.c.b16 %v405, %v401
      %v514 = vpack.c.b16 %v410, %v406
      %v515 = vpack.c.b16 %v411, %v407
      %v516 = vpack.c.b16 %v412, %v408
      %v517 = vpack.c.b16 %v413, %v409
      %v518 = vpack.c.b16 %v418, %v414
      %v519 = vpack.c.b16 %v419, %v415
      %v520 = vpack.c.b16 %v420, %v416
      %v521 = vpack.c.b16 %v421, %v417
      %v522 = vpack.c.b16 %v426, %v422
      %v523 = vpack.c.b16 %v427, %v423
      %v524 = vpack.c.b16 %v428, %v424
      %v525 = vpack.c.b16 %v429, %v425
      %v526 = vpack.c.b16 %v434, %v430
      %v527 = vpack.c.b16 %v435, %v431
      %v528 = vpack.c.b16 %v436, %v432
      %v529 = vpack.c.b16 %v437, %v433
      %v530 = vpack.c.b16 %v442, %v438
      %v531 = vpack.c.b16 %v443, %v439
      %v532 = vpack.c.b16 %v444, %v440
      %v533 = vpack.c.b16 %v445, %v441
      %v534 = vpack.c.b16 %v450, %v446
      %v535 = vpack.c.b16 %v451, %v447
      %v536 = vpack.c.b16 %v452, %v448
      %v537 = vpack.c.b16 %v453, %v449
      %v538 = vpack.c.b16 %v458, %v454
      %v539 = vpack.c.b16 %v459, %v455
      %v540 = vpack.c.b16 %v460, %v456
      %v541 = vpack.c.b16 %v461, %v457
      %v542 = vpack.c.b16 %v466, %v462
      %v543 = vpack.c.b16 %v467, %v463
      %v544 = vpack.c.b16 %v468, %v464
      %v545 = vpack.c.b16 %v469, %v465
      %v546 = vpack.c.b16 %v474, %v470
      %v547 = vpack.c.b16 %v475, %v471
      %v548 = vpack.c.b16 %v476, %v472
      %v549 = vpack.c.b16 %v477, %v473
      %v550 = vpack.c.b16 %v482, %v478
      %v551 = vpack.c.b16 %v483, %v479
      %v552 = vpack.c.b16 %v484, %v480
      %v553 = vpack.c.b16 %v485, %v481
      %v554 = vpack.c.b16 %v490, %v486
      %v555 = vpack.c.b16 %v491, %v487
      %v556 = vpack.c.b16 %v492, %v488
      %v557 = vpack.c.b16 %v493, %v489
      %622 = vmatprep.subr.bf16.mxu0 %v523
      %623 = vmatpush1.bf16.msra.mxu0 %v522
      %624 = vmatprep.subr.bf16.mxu0 %v519
      %625 = vmatpush1.bf16.msra.mxu0 %v518
      %626 = vmatprep.subr.bf16.mxu0 %v515
      %627 = vmatpush1.bf16.msra.mxu0 %v514
      %628 = vmatprep.subr.bf16.mxu0 %v511
      %629 = vmatpush1.bf16.msra.mxu0 %v510
      %630 = vmatprep.subr.bf16.mxu0 %v507
      %631 = vmatpush1.bf16.msra.mxu0 %v506
      %632 = vmatprep.subr.bf16.mxu0 %v503
      %633 = vmatpush1.bf16.msra.mxu0 %v502
      %634 = vmatprep.subr.bf16.mxu0 %v499
      %635 = vmatpush1.bf16.msra.mxu0 %v498
      %636 = vmatprep.subr.bf16.mxu0 %v495
      %637 = vmatpush1.bf16.msra.mxu0 %v494
      %638 = vmatprep.subr.bf16.mxu0 %v555
      %639 = vmatpush2.bf16.msra.mxu0 %v554
      %640 = vmatprep.subr.bf16.mxu0 %v551
      %641 = vmatpush2.bf16.msra.mxu0 %v550
      %642 = vmatprep.subr.bf16.mxu0 %v547
      %643 = vmatpush2.bf16.msra.mxu0 %v546
      %644 = vmatprep.subr.bf16.mxu0 %v543
      %645 = vmatpush2.bf16.msra.mxu0 %v542
      %646 = vmatprep.subr.bf16.mxu0 %v539
      %647 = vmatpush2.bf16.msra.mxu0 %v538
      %648 = vmatprep.subr.bf16.mxu0 %v535
      %649 = vmatpush2.bf16.msra.mxu0 %v534
      %650 = vmatprep.subr.bf16.mxu0 %v531
      %651 = vmatpush2.bf16.msra.mxu0 %v530
      %652 = vmatprep.subr.bf16.mxu0 %v527
      %653 = vmatpush2.bf16.msra.mxu0 %v526
      %654 = vmatprep.mubr.bf16.mxu0 %v237
      %655 = vmatmul.mubr.bf16.gmra.mxu0 %v236
      %v656 = vpop.f32.mrf.mxu0
      %v657 = vadd.f32 0.0, %v656
      %v658 = vpop.f32.mrf.mxu0
      %v659 = vadd.f32 0.0, %v658
      %v660 = vpop.f32.mrf.mxu0
      %v661 = vadd.f32 0.0, %v660
      %v662 = vpop.f32.mrf.mxu0
      %v663 = vadd.f32 0.0, %v662
      %664 = vdwg.mxu0
      %665 = vmatprep.subr.bf16.mxu0 %v525
      %666 = vmatpush1.bf16.msra.mxu0 %v524
      %667 = vmatprep.subr.bf16.mxu0 %v521
      %668 = vmatpush1.bf16.msra.mxu0 %v520
      %669 = vmatprep.subr.bf16.mxu0 %v517
      %670 = vmatpush1.bf16.msra.mxu0 %v516
      %671 = vmatprep.subr.bf16.mxu0 %v513
      %672 = vmatpush1.bf16.msra.mxu0 %v512
      %673 = vmatprep.subr.bf16.mxu0 %v509
      %674 = vmatpush1.bf16.msra.mxu0 %v508
      %675 = vmatprep.subr.bf16.mxu0 %v505
      %676 = vmatpush1.bf16.msra.mxu0 %v504
      %677 = vmatprep.subr.bf16.mxu0 %v501
      %678 = vmatpush1.bf16.msra.mxu0 %v500
      %679 = vmatprep.subr.bf16.mxu0 %v497
      %680 = vmatpush1.bf16.msra.mxu0 %v496
      %681 = vmatprep.subr.bf16.mxu0 %v557
      %682 = vmatpush2.bf16.msra.mxu0 %v556
      %683 = vmatprep.subr.bf16.mxu0 %v553
      %684 = vmatpush2.bf16.msra.mxu0 %v552
      %685 = vmatprep.subr.bf16.mxu0 %v549
      %686 = vmatpush2.bf16.msra.mxu0 %v548
      %687 = vmatprep.subr.bf16.mxu0 %v545
      %688 = vmatpush2.bf16.msra.mxu0 %v544
      %689 = vmatprep.subr.bf16.mxu0 %v541
      %690 = vmatpush2.bf16.msra.mxu0 %v540
      %691 = vmatprep.subr.bf16.mxu0 %v537
      %692 = vmatpush2.bf16.msra.mxu0 %v536
      %693 = vmatprep.subr.bf16.mxu0 %v533
      %694 = vmatpush2.bf16.msra.mxu0 %v532
      %695 = vmatprep.subr.bf16.mxu0 %v529
      %696 = vmatpush2.bf16.msra.mxu0 %v528
      %697 = vmatprep.mubr.bf16.mxu0 %v237
      %698 = vmatmul.mubr.bf16.gmra.mxu0 %v236
      %v699 = vpop.f32.mrf.mxu0
      %v700 = vadd.f32 0.0, %v699
      %v701 = vpop.f32.mrf.mxu0
      %v702 = vadd.f32 0.0, %v701
      %v703 = vpop.f32.mrf.mxu0
      %v704 = vadd.f32 0.0, %v703
      %v705 = vpop.f32.mrf.mxu0
      %v706 = vadd.f32 0.0, %v705
      %707 = vdwg.mxu0
      %v708 = vld [vmem:[%s4] ss:$8 sm:$0xf]
      %v710 = vlaneseq
      %v711 = vshrl.u32 %v710, 7
      %v712 = vsub.s32 0, %v711
      %v713 = vrot.slane %v708, %v712
      %v714 = vlaneseq
      %v715 = vshrl.u32 %v714, 7
      %v716 = vsub.s32 1, %v715
      %v717 = vrot.slane %v708, %v716
      %v718 = vlaneseq
      %v719 = vshrl.u32 %v718, 7
      %v720 = vsub.s32 2, %v719
      %v721 = vrot.slane %v708, %v720
      %v722 = vlaneseq
      %v723 = vshrl.u32 %v722, 7
      %v724 = vsub.s32 3, %v723
      %v725 = vrot.slane %v708, %v724
      %v730 = vmul.f32 %v657, %v713
      %v731 = vmul.f32 %v659, %v717
      %v732 = vmul.f32 %v700, %v721
      %v733 = vmul.f32 %v702, %v725
      %v734 = vmul.f32 %v661, %v713
      %v735 = vmul.f32 %v663, %v717
      %v736 = vmul.f32 %v704, %v721
      %v737 = vmul.f32 %v706, %v725
      %s738 = scalar_lea.vmem %s4, 1
      %v739 = vld [vmem:[%s738] ss:$8 sm:$0xf]
      %v741 = vlaneseq
      %v742 = vshrl.u32 %v741, 7
      %v743 = vsub.s32 0, %v742
      %v744 = vrot.slane %v739, %v743
      %v745 = vlaneseq
      %v746 = vshrl.u32 %v745, 7
      %v747 = vsub.s32 1, %v746
      %v748 = vrot.slane %v739, %v747
      %v749 = vlaneseq
      %v750 = vshrl.u32 %v749, 7
      %v751 = vsub.s32 2, %v750
      %v752 = vrot.slane %v739, %v751
      %v753 = vlaneseq
      %v754 = vshrl.u32 %v753, 7
      %v755 = vsub.s32 3, %v754
      %v756 = vrot.slane %v739, %v755
      %v761 = vadd.f32 %v730, %v744
      %v762 = vadd.f32 %v731, %v748
      %v763 = vadd.f32 %v732, %v752
      %v764 = vadd.f32 %v733, %v756
      %v765 = vadd.f32 %v734, %v744
      %v766 = vadd.f32 %v735, %v748
      %v767 = vadd.f32 %v736, %v752
      %v768 = vadd.f32 %v737, %v756
      %v769 = vmax.f32 %v761, 0.0
      %v770 = vmax.f32 %v762, 0.0
      %v771 = vmax.f32 %v763, 0.0
      %v772 = vmax.f32 %v764, 0.0
      %v773 = vmax.f32 %v765, 0.0
      %v774 = vmax.f32 %v766, 0.0
      %v775 = vmax.f32 %v767, 0.0
      %v776 = vmax.f32 %v768, 0.0
      %v777 = vpack.c.bf16 %v773, %v769
      %v778 = vpack.c.bf16 %v774, %v770
      %v779 = vpack.c.bf16 %v775, %v771
      %v780 = vpack.c.bf16 %v776, %v772
      %v781 = vld [vmem:[%s2] sm:$0xff]
      %v782 = vld [vmem:[%s2 + $0x8] sm:$0xff]
      %v783 = vld [vmem:[%s2 + $0x10] sm:$0xff]
      %v784 = vld [vmem:[%s2 + $0x18] sm:$0xff]
      %v785 = vld [vmem:[%s2 + $0x20] sm:$0xff]
      %v786 = vld [vmem:[%s2 + $0x28] sm:$0xff]
      %v787 = vld [vmem:[%s2 + $0x30] sm:$0xff]
      %v788 = vld [vmem:[%s2 + $0x38] sm:$0xff]
      %v789 = vld [vmem:[%s2 + $0x40] sm:$0xff]
      %v790 = vld [vmem:[%s2 + $0x48] sm:$0xff]
      %v791 = vld [vmem:[%s2 + $0x50] sm:$0xff]
      %v792 = vld [vmem:[%s2 + $0x58] sm:$0xff]
      %v793 = vld [vmem:[%s2 + $0x60] sm:$0xff]
      %v794 = vld [vmem:[%s2 + $0x68] sm:$0xff]
      %v795 = vld [vmem:[%s2 + $0x70] sm:$0xff]
      %v796 = vld [vmem:[%s2 + $0x78] sm:$0xff]
      %v797 = vld [vmem:[%s2 + $0x80] sm:$0xff]
      %v798 = vld [vmem:[%s2 + $0x88] sm:$0xff]
      %v799 = vld [vmem:[%s2 + $0x90] sm:$0xff]
      %v800 = vld [vmem:[%s2 + $0x98] sm:$0xff]
      %v801 = vld [vmem:[%s2 + $0xa0] sm:$0xff]
      %v802 = vld [vmem:[%s2 + $0xa8] sm:$0xff]
      %v803 = vld [vmem:[%s2 + $0xb0] sm:$0xff]
      %v804 = vld [vmem:[%s2 + $0xb8] sm:$0xff]
      %v805 = vld [vmem:[%s2 + $0xc0] sm:$0xff]
      %v806 = vld [vmem:[%s2 + $0xc8] sm:$0xff]
      %v807 = vld [vmem:[%s2 + $0xd0] sm:$0xff]
      %v808 = vld [vmem:[%s2 + $0xd8] sm:$0xff]
      %v809 = vld [vmem:[%s2 + $0xe0] sm:$0xff]
      %v810 = vld [vmem:[%s2 + $0xe8] sm:$0xff]
      %v811 = vld [vmem:[%s2 + $0xf0] sm:$0xff]
      %v812 = vld [vmem:[%s2 + $0xf8] sm:$0xff]
      %v813 = vld [vmem:[%s2 + $0x100] sm:$0xff]
      %v814 = vld [vmem:[%s2 + $0x108] sm:$0xff]
      %v815 = vld [vmem:[%s2 + $0x110] sm:$0xff]
      %v816 = vld [vmem:[%s2 + $0x118] sm:$0xff]
      %v817 = vld [vmem:[%s2 + $0x120] sm:$0xff]
      %v818 = vld [vmem:[%s2 + $0x128] sm:$0xff]
      %v819 = vld [vmem:[%s2 + $0x130] sm:$0xff]
      %v820 = vld [vmem:[%s2 + $0x138] sm:$0xff]
      %v821 = vld [vmem:[%s2 + $0x140] sm:$0xff]
      %v822 = vld [vmem:[%s2 + $0x148] sm:$0xff]
      %v823 = vld [vmem:[%s2 + $0x150] sm:$0xff]
      %v824 = vld [vmem:[%s2 + $0x158] sm:$0xff]
      %v825 = vld [vmem:[%s2 + $0x160] sm:$0xff]
      %v826 = vld [vmem:[%s2 + $0x168] sm:$0xff]
      %v827 = vld [vmem:[%s2 + $0x170] sm:$0xff]
      %v828 = vld [vmem:[%s2 + $0x178] sm:$0xff]
      %v829 = vld [vmem:[%s2 + $0x180] sm:$0xff]
      %v830 = vld [vmem:[%s2 + $0x188] sm:$0xff]
      %v831 = vld [vmem:[%s2 + $0x190] sm:$0xff]
      %v832 = vld [vmem:[%s2 + $0x198] sm:$0xff]
      %v833 = vld [vmem:[%s2 + $0x1a0] sm:$0xff]
      %v834 = vld [vmem:[%s2 + $0x1a8] sm:$0xff]
      %v835 = vld [vmem:[%s2 + $0x1b0] sm:$0xff]
      %v836 = vld [vmem:[%s2 + $0x1b8] sm:$0xff]
      %v837 = vld [vmem:[%s2 + $0x1c0] sm:$0xff]
      %v838 = vld [vmem:[%s2 + $0x1c8] sm:$0xff]
      %v839 = vld [vmem:[%s2 + $0x1d0] sm:$0xff]
      %v840 = vld [vmem:[%s2 + $0x1d8] sm:$0xff]
      %v841 = vld [vmem:[%s2 + $0x1e0] sm:$0xff]
      %v842 = vld [vmem:[%s2 + $0x1e8] sm:$0xff]
      %v843 = vld [vmem:[%s2 + $0x1f0] sm:$0xff]
      %v844 = vld [vmem:[%s2 + $0x1f8] sm:$0xff]
      %v909 = vunpack.c.l.b16 %v781
      %v910 = vunpack.c.h.b16 %v781
      %v911 = vunpack.c.l.b16 %v782
      %v912 = vunpack.c.h.b16 %v782
      %v913 = vunpack.c.l.b16 %v783
      %v914 = vunpack.c.h.b16 %v783
      %v915 = vunpack.c.l.b16 %v784
      %v916 = vunpack.c.h.b16 %v784
      %v917 = vunpack.c.l.b16 %v785
      %v918 = vunpack.c.h.b16 %v785
      %v919 = vunpack.c.l.b16 %v786
      %v920 = vunpack.c.h.b16 %v786
      %v921 = vunpack.c.l.b16 %v787
      %v922 = vunpack.c.h.b16 %v787
      %v923 = vunpack.c.l.b16 %v788
      %v924 = vunpack.c.h.b16 %v788
      %v925 = vunpack.c.l.b16 %v789
      %v926 = vunpack.c.h.b16 %v789
      %v927 = vunpack.c.l.b16 %v790
      %v928 = vunpack.c.h.b16 %v790
      %v929 = vunpack.c.l.b16 %v791
      %v930 = vunpack.c.h.b16 %v791
      %v931 = vunpack.c.l.b16 %v792
      %v932 = vunpack.c.h.b16 %v792
      %v933 = vunpack.c.l.b16 %v793
      %v934 = vunpack.c.h.b16 %v793
      %v935 = vunpack.c.l.b16 %v794
      %v936 = vunpack.c.h.b16 %v794
      %v937 = vunpack.c.l.b16 %v795
      %v938 = vunpack.c.h.b16 %v795
      %v939 = vunpack.c.l.b16 %v796
      %v940 = vunpack.c.h.b16 %v796
      %v941 = vunpack.c.l.b16 %v797
      %v942 = vunpack.c.h.b16 %v797
      %v943 = vunpack.c.l.b16 %v798
      %v944 = vunpack.c.h.b16 %v798
      %v945 = vunpack.c.l.b16 %v799
      %v946 = vunpack.c.h.b16 %v799
      %v947 = vunpack.c.l.b16 %v800
      %v948 = vunpack.c.h.b16 %v800
      %v949 = vunpack.c.l.b16 %v801
      %v950 = vunpack.c.h.b16 %v801
      %v951 = vunpack.c.l.b16 %v802
      %v952 = vunpack.c.h.b16 %v802
      %v953 = vunpack.c.l.b16 %v803
      %v954 = vunpack.c.h.b16 %v803
      %v955 = vunpack.c.l.b16 %v804
      %v956 = vunpack.c.h.b16 %v804
      %v957 = vunpack.c.l.b16 %v805
      %v958 = vunpack.c.h.b16 %v805
      %v959 = vunpack.c.l.b16 %v806
      %v960 = vunpack.c.h.b16 %v806
      %v961 = vunpack.c.l.b16 %v807
      %v962 = vunpack.c.h.b16 %v807
      %v963 = vunpack.c.l.b16 %v808
      %v964 = vunpack.c.h.b16 %v808
      %v965 = vunpack.c.l.b16 %v809
      %v966 = vunpack.c.h.b16 %v809
      %v967 = vunpack.c.l.b16 %v810
      %v968 = vunpack.c.h.b16 %v810
      %v969 = vunpack.c.l.b16 %v811
      %v970 = vunpack.c.h.b16 %v811
      %v971 = vunpack.c.l.b16 %v812
      %v972 = vunpack.c.h.b16 %v812
      %v973 = vunpack.c.l.b16 %v813
      %v974 = vunpack.c.h.b16 %v813
      %v975 = vunpack.c.l.b16 %v814
      %v976 = vunpack.c.h.b16 %v814
      %v977 = vunpack.c.l.b16 %v815
      %v978 = vunpack.c.h.b16 %v815
      %v979 = vunpack.c.l.b16 %v816
      %v980 = vunpack.c.h.b16 %v816
      %v981 = vunpack.c.l.b16 %v817
      %v982 = vunpack.c.h.b16 %v817
      %v983 = vunpack.c.l.b16 %v818
      %v984 = vunpack.c.h.b16 %v818
      %v985 = vunpack.c.l.b16 %v819
      %v986 = vunpack.c.h.b16 %v819
      %v987 = vunpack.c.l.b16 %v820
      %v988 = vunpack.c.h.b16 %v820
      %v989 = vunpack.c.l.b16 %v821
      %v990 = vunpack.c.h.b16 %v821
      %v991 = vunpack.c.l.b16 %v822
      %v992 = vunpack.c.h.b16 %v822
      %v993 = vunpack.c.l.b16 %v823
      %v994 = vunpack.c.h.b16 %v823
      %v995 = vunpack.c.l.b16 %v824
      %v996 = vunpack.c.h.b16 %v824
      %v997 = vunpack.c.l.b16 %v825
      %v998 = vunpack.c.h.b16 %v825
      %v999 = vunpack.c.l.b16 %v826
      %v1000 = vunpack.c.h.b16 %v826
      %v1001 = vunpack.c.l.b16 %v827
      %v1002 = vunpack.c.h.b16 %v827
      %v1003 = vunpack.c.l.b16 %v828
      %v1004 = vunpack.c.h.b16 %v828
      %v1005 = vunpack.c.l.b16 %v829
      %v1006 = vunpack.c.h.b16 %v829
      %v1007 = vunpack.c.l.b16 %v830
      %v1008 = vunpack.c.h.b16 %v830
      %v1009 = vunpack.c.l.b16 %v831
      %v1010 = vunpack.c.h.b16 %v831
      %v1011 = vunpack.c.l.b16 %v832
      %v1012 = vunpack.c.h.b16 %v832
      %v1013 = vunpack.c.l.b16 %v833
      %v1014 = vunpack.c.h.b16 %v833
      %v1015 = vunpack.c.l.b16 %v834
      %v1016 = vunpack.c.h.b16 %v834
      %v1017 = vunpack.c.l.b16 %v835
      %v1018 = vunpack.c.h.b16 %v835
      %v1019 = vunpack.c.l.b16 %v836
      %v1020 = vunpack.c.h.b16 %v836
      %v1021 = vunpack.c.l.b16 %v837
      %v1022 = vunpack.c.h.b16 %v837
      %v1023 = vunpack.c.l.b16 %v838
      %v1024 = vunpack.c.h.b16 %v838
      %v1025 = vunpack.c.l.b16 %v839
      %v1026 = vunpack.c.h.b16 %v839
      %v1027 = vunpack.c.l.b16 %v840
      %v1028 = vunpack.c.h.b16 %v840
      %v1029 = vunpack.c.l.b16 %v841
      %v1030 = vunpack.c.h.b16 %v841
      %v1031 = vunpack.c.l.b16 %v842
      %v1032 = vunpack.c.h.b16 %v842
      %v1033 = vunpack.c.l.b16 %v843
      %v1034 = vunpack.c.h.b16 %v843
      %v1035 = vunpack.c.l.b16 %v844
      %v1036 = vunpack.c.h.b16 %v844
      %v1037 = vpack.c.b16 %v911, %v909
      %v1038 = vpack.c.b16 %v912, %v910
      %v1039 = vpack.c.b16 %v915, %v913
      %v1040 = vpack.c.b16 %v916, %v914
      %v1041 = vpack.c.b16 %v919, %v917
      %v1042 = vpack.c.b16 %v920, %v918
      %v1043 = vpack.c.b16 %v923, %v921
      %v1044 = vpack.c.b16 %v924, %v922
      %v1045 = vpack.c.b16 %v927, %v925
      %v1046 = vpack.c.b16 %v928, %v926
      %v1047 = vpack.c.b16 %v931, %v929
      %v1048 = vpack.c.b16 %v932, %v930
      %v1049 = vpack.c.b16 %v935, %v933
      %v1050 = vpack.c.b16 %v936, %v934
      %v1051 = vpack.c.b16 %v939, %v937
      %v1052 = vpack.c.b16 %v940, %v938
      %v1053 = vpack.c.b16 %v943, %v941
      %v1054 = vpack.c.b16 %v944, %v942
      %v1055 = vpack.c.b16 %v947, %v945
      %v1056 = vpack.c.b16 %v948, %v946
      %v1057 = vpack.c.b16 %v951, %v949
      %v1058 = vpack.c.b16 %v952, %v950
      %v1059 = vpack.c.b16 %v955, %v953
      %v1060 = vpack.c.b16 %v956, %v954
      %v1061 = vpack.c.b16 %v959, %v957
      %v1062 = vpack.c.b16 %v960, %v958
      %v1063 = vpack.c.b16 %v963, %v961
      %v1064 = vpack.c.b16 %v964, %v962
      %v1065 = vpack.c.b16 %v967, %v965
      %v1066 = vpack.c.b16 %v968, %v966
      %v1067 = vpack.c.b16 %v971, %v969
      %v1068 = vpack.c.b16 %v972, %v970
      %v1069 = vpack.c.b16 %v975, %v973
      %v1070 = vpack.c.b16 %v976, %v974
      %v1071 = vpack.c.b16 %v979, %v977
      %v1072 = vpack.c.b16 %v980, %v978
      %v1073 = vpack.c.b16 %v983, %v981
      %v1074 = vpack.c.b16 %v984, %v982
      %v1075 = vpack.c.b16 %v987, %v985
      %v1076 = vpack.c.b16 %v988, %v986
      %v1077 = vpack.c.b16 %v991, %v989
      %v1078 = vpack.c.b16 %v992, %v990
      %v1079 = vpack.c.b16 %v995, %v993
      %v1080 = vpack.c.b16 %v996, %v994
      %v1081 = vpack.c.b16 %v999, %v997
      %v1082 = vpack.c.b16 %v1000, %v998
      %v1083 = vpack.c.b16 %v1003, %v1001
      %v1084 = vpack.c.b16 %v1004, %v1002
      %v1085 = vpack.c.b16 %v1007, %v1005
      %v1086 = vpack.c.b16 %v1008, %v1006
      %v1087 = vpack.c.b16 %v1011, %v1009
      %v1088 = vpack.c.b16 %v1012, %v1010
      %v1089 = vpack.c.b16 %v1015, %v1013
      %v1090 = vpack.c.b16 %v1016, %v1014
      %v1091 = vpack.c.b16 %v1019, %v1017
      %v1092 = vpack.c.b16 %v1020, %v1018
      %v1093 = vpack.c.b16 %v1023, %v1021
      %v1094 = vpack.c.b16 %v1024, %v1022
      %v1095 = vpack.c.b16 %v1027, %v1025
      %v1096 = vpack.c.b16 %v1028, %v1026
      %v1097 = vpack.c.b16 %v1031, %v1029
      %v1098 = vpack.c.b16 %v1032, %v1030
      %v1099 = vpack.c.b16 %v1035, %v1033
      %v1100 = vpack.c.b16 %v1036, %v1034
      %1165 = vmatprep.subr.bf16.mxu0 %v1052
      %1166 = vmatpush1.bf16.msra.mxu0 %v1051
      %1167 = vmatprep.subr.bf16.mxu0 %v1050
      %1168 = vmatpush1.bf16.msra.mxu0 %v1049
      %1169 = vmatprep.subr.bf16.mxu0 %v1048
      %1170 = vmatpush1.bf16.msra.mxu0 %v1047
      %1171 = vmatprep.subr.bf16.mxu0 %v1046
      %1172 = vmatpush1.bf16.msra.mxu0 %v1045
      %1173 = vmatprep.subr.bf16.mxu0 %v1044
      %1174 = vmatpush1.bf16.msra.mxu0 %v1043
      %1175 = vmatprep.subr.bf16.mxu0 %v1042
      %1176 = vmatpush1.bf16.msra.mxu0 %v1041
      %1177 = vmatprep.subr.bf16.mxu0 %v1040
      %1178 = vmatpush1.bf16.msra.mxu0 %v1039
      %1179 = vmatprep.subr.bf16.mxu0 %v1038
      %1180 = vmatpush1.bf16.msra.mxu0 %v1037
      %1181 = vmatprep.subr.bf16.mxu0 %v1068
      %1182 = vmatpush2.bf16.msra.mxu0 %v1067
      %1183 = vmatprep.subr.bf16.mxu0 %v1066
      %1184 = vmatpush2.bf16.msra.mxu0 %v1065
      %1185 = vmatprep.subr.bf16.mxu0 %v1064
      %1186 = vmatpush2.bf16.msra.mxu0 %v1063
      %1187 = vmatprep.subr.bf16.mxu0 %v1062
      %1188 = vmatpush2.bf16.msra.mxu0 %v1061
      %1189 = vmatprep.subr.bf16.mxu0 %v1060
      %1190 = vmatpush2.bf16.msra.mxu0 %v1059
      %1191 = vmatprep.subr.bf16.mxu0 %v1058
      %1192 = vmatpush2.bf16.msra.mxu0 %v1057
      %1193 = vmatprep.subr.bf16.mxu0 %v1056
      %1194 = vmatpush2.bf16.msra.mxu0 %v1055
      %1195 = vmatprep.subr.bf16.mxu0 %v1054
      %1196 = vmatpush2.bf16.msra.mxu0 %v1053
      %1197 = vmatprep.mubr.bf16.mxu0 %v778
      %1198 = vmatmul.mubr.bf16.gmra.mxu0 %v777
      %v1199 = vpop.f32.mrf.mxu0
      %v1200 = vadd.f32 0.0, %v1199
      %v1201 = vpop.f32.mrf.mxu0
      %v1202 = vadd.f32 0.0, %v1201
      %v1203 = vpop.f32.mrf.mxu0
      %v1204 = vadd.f32 0.0, %v1203
      %v1205 = vpop.f32.mrf.mxu0
      %v1206 = vadd.f32 0.0, %v1205
      %1207 = vdwg.mxu0
      %1208 = vmatprep.subr.bf16.mxu0 %v1084
      %1209 = vmatpush1.bf16.msra.mxu0 %v1083
      %1210 = vmatprep.subr.bf16.mxu0 %v1082
      %1211 = vmatpush1.bf16.msra.mxu0 %v1081
      %1212 = vmatprep.subr.bf16.mxu0 %v1080
      %1213 = vmatpush1.bf16.msra.mxu0 %v1079
      %1214 = vmatprep.subr.bf16.mxu0 %v1078
      %1215 = vmatpush1.bf16.msra.mxu0 %v1077
      %1216 = vmatprep.subr.bf16.mxu0 %v1076
      %1217 = vmatpush1.bf16.msra.mxu0 %v1075
      %1218 = vmatprep.subr.bf16.mxu0 %v1074
      %1219 = vmatpush1.bf16.msra.mxu0 %v1073
      %1220 = vmatprep.subr.bf16.mxu0 %v1072
      %1221 = vmatpush1.bf16.msra.mxu0 %v1071
      %1222 = vmatprep.subr.bf16.mxu0 %v1070
      %1223 = vmatpush1.bf16.msra.mxu0 %v1069
      %1224 = vmatprep.subr.bf16.mxu0 %v1100
      %1225 = vmatpush2.bf16.msra.mxu0 %v1099
      %1226 = vmatprep.subr.bf16.mxu0 %v1098
      %1227 = vmatpush2.bf16.msra.mxu0 %v1097
      %1228 = vmatprep.subr.bf16.mxu0 %v1096
      %1229 = vmatpush2.bf16.msra.mxu0 %v1095
      %1230 = vmatprep.subr.bf16.mxu0 %v1094
      %1231 = vmatpush2.bf16.msra.mxu0 %v1093
      %1232 = vmatprep.subr.bf16.mxu0 %v1092
      %1233 = vmatpush2.bf16.msra.mxu0 %v1091
      %1234 = vmatprep.subr.bf16.mxu0 %v1090
      %1235 = vmatpush2.bf16.msra.mxu0 %v1089
      %1236 = vmatprep.subr.bf16.mxu0 %v1088
      %1237 = vmatpush2.bf16.msra.mxu0 %v1087
      %1238 = vmatprep.subr.bf16.mxu0 %v1086
      %1239 = vmatpush2.bf16.msra.mxu0 %v1085
      %1240 = vmatprep.mubr.bf16.mxu0 %v780
      %1241 = vmatmul.mubr.bf16.gmra.mxu0 %v779
      %v1242 = vpop.f32.mrf.mxu0
      %v1243 = vadd.f32 %v1200, %v1242
      %v1244 = vpop.f32.mrf.mxu0
      %v1245 = vadd.f32 %v1202, %v1244
      %v1246 = vpop.f32.mrf.mxu0
      %v1247 = vadd.f32 %v1204, %v1246
      %v1248 = vpop.f32.mrf.mxu0
      %v1249 = vadd.f32 %v1206, %v1248
      %1250 = vdwg.mxu0
      %s1251 = scalar_lea.vmem %s4, 2
      %v1252 = vld [vmem:[%s1251] ss:$8 sm:$0x3]
      %v1254 = vlaneseq
      %v1255 = vshrl.u32 %v1254, 7
      %v1256 = vsub.s32 0, %v1255
      %v1257 = vrot.slane %v1252, %v1256
      %v1258 = vlaneseq
      %v1259 = vshrl.u32 %v1258, 7
      %v1260 = vsub.s32 1, %v1259
      %v1261 = vrot.slane %v1252, %v1260
      %v1264 = vmul.f32 %v1243, %v1257
      %v1265 = vmul.f32 %v1245, %v1261
      %v1266 = vmul.f32 %v1247, %v1257
      %v1267 = vmul.f32 %v1249, %v1261
      %s1268 = scalar_lea.vmem %s4, 3
      %v1269 = vld [vmem:[%s1268] ss:$8 sm:$0x3]
      %v1271 = vlaneseq
      %v1272 = vshrl.u32 %v1271, 7
      %v1273 = vsub.s32 0, %v1272
      %v1274 = vrot.slane %v1269, %v1273
      %v1275 = vlaneseq
      %v1276 = vshrl.u32 %v1275, 7
      %v1277 = vsub.s32 1, %v1276
      %v1278 = vrot.slane %v1269, %v1277
      %v1281 = vadd.f32 %v1264, %v1274
      %v1282 = vadd.f32 %v1265, %v1278
      %v1283 = vadd.f32 %v1266, %v1274
      %v1284 = vadd.f32 %v1267, %v1278
      %v1285 = vmax.f32 %v1281, 0.0
      %v1286 = vmax.f32 %v1282, 0.0
      %v1287 = vmax.f32 %v1283, 0.0
      %v1288 = vmax.f32 %v1284, 0.0
      %v1289 = vpack.c.bf16 %v1287, %v1285
      %v1290 = vpack.c.bf16 %v1288, %v1286
      %v1291 = vld [vmem:[%s3] sm:$0xf]
      %v1292 = vld [vmem:[%s3 + $0x4] sm:$0xf]
      %v1293 = vld [vmem:[%s3 + $0x8] sm:$0xf]
      %v1294 = vld [vmem:[%s3 + $0xc] sm:$0xf]
      %v1295 = vld [vmem:[%s3 + $0x10] sm:$0xf]
      %v1296 = vld [vmem:[%s3 + $0x14] sm:$0xf]
      %v1297 = vld [vmem:[%s3 + $0x18] sm:$0xf]
      %v1298 = vld [vmem:[%s3 + $0x1c] sm:$0xf]
      %v1299 = vld [vmem:[%s3 + $0x20] sm:$0xf]
      %v1300 = vld [vmem:[%s3 + $0x24] sm:$0xf]
      %v1301 = vld [vmem:[%s3 + $0x28] sm:$0xf]
      %v1302 = vld [vmem:[%s3 + $0x2c] sm:$0xf]
      %v1303 = vld [vmem:[%s3 + $0x30] sm:$0xf]
      %v1304 = vld [vmem:[%s3 + $0x34] sm:$0xf]
      %v1305 = vld [vmem:[%s3 + $0x38] sm:$0xf]
      %v1306 = vld [vmem:[%s3 + $0x3c] sm:$0xf]
      %v1307 = vld [vmem:[%s3 + $0x40] sm:$0xf]
      %v1308 = vld [vmem:[%s3 + $0x44] sm:$0xf]
      %v1309 = vld [vmem:[%s3 + $0x48] sm:$0xf]
      %v1310 = vld [vmem:[%s3 + $0x4c] sm:$0xf]
      %v1311 = vld [vmem:[%s3 + $0x50] sm:$0xf]
      %v1312 = vld [vmem:[%s3 + $0x54] sm:$0xf]
      %v1313 = vld [vmem:[%s3 + $0x58] sm:$0xf]
      %v1314 = vld [vmem:[%s3 + $0x5c] sm:$0xf]
      %v1315 = vld [vmem:[%s3 + $0x60] sm:$0xf]
      %v1316 = vld [vmem:[%s3 + $0x64] sm:$0xf]
      %v1317 = vld [vmem:[%s3 + $0x68] sm:$0xf]
      %v1318 = vld [vmem:[%s3 + $0x6c] sm:$0xf]
      %v1319 = vld [vmem:[%s3 + $0x70] sm:$0xf]
      %v1320 = vld [vmem:[%s3 + $0x74] sm:$0xf]
      %v1321 = vld [vmem:[%s3 + $0x78] sm:$0xf]
      %v1322 = vld [vmem:[%s3 + $0x7c] sm:$0xf]
      %v1323 = vld [vmem:[%s4 + $0x4] ss:$0 sm:$0xff]
      %v1356 = vunpack.c.l.b16 %v1291
      %v1357 = vunpack.c.l.b16 %v1292
      %v1358 = vunpack.c.l.b16 %v1293
      %v1359 = vunpack.c.l.b16 %v1294
      %v1360 = vunpack.c.l.b16 %v1295
      %v1361 = vunpack.c.l.b16 %v1296
      %v1362 = vunpack.c.l.b16 %v1297
      %v1363 = vunpack.c.l.b16 %v1298
      %v1364 = vunpack.c.l.b16 %v1299
      %v1365 = vunpack.c.l.b16 %v1300
      %v1366 = vunpack.c.l.b16 %v1301
      %v1367 = vunpack.c.l.b16 %v1302
      %v1368 = vunpack.c.l.b16 %v1303
      %v1369 = vunpack.c.l.b16 %v1304
      %v1370 = vunpack.c.l.b16 %v1305
      %v1371 = vunpack.c.l.b16 %v1306
      %v1372 = vunpack.c.l.b16 %v1307
      %v1373 = vunpack.c.l.b16 %v1308
      %v1374 = vunpack.c.l.b16 %v1309
      %v1375 = vunpack.c.l.b16 %v1310
      %v1376 = vunpack.c.l.b16 %v1311
      %v1377 = vunpack.c.l.b16 %v1312
      %v1378 = vunpack.c.l.b16 %v1313
      %v1379 = vunpack.c.l.b16 %v1314
      %v1380 = vunpack.c.l.b16 %v1315
      %v1381 = vunpack.c.l.b16 %v1316
      %v1382 = vunpack.c.l.b16 %v1317
      %v1383 = vunpack.c.l.b16 %v1318
      %v1384 = vunpack.c.l.b16 %v1319
      %v1385 = vunpack.c.l.b16 %v1320
      %v1386 = vunpack.c.l.b16 %v1321
      %v1387 = vunpack.c.l.b16 %v1322
      %v1388 = vpack.c.b16 %v1357, %v1356
      %v1389 = vpack.c.b16 %v1359, %v1358
      %v1390 = vpack.c.b16 %v1361, %v1360
      %v1391 = vpack.c.b16 %v1363, %v1362
      %v1392 = vpack.c.b16 %v1365, %v1364
      %v1393 = vpack.c.b16 %v1367, %v1366
      %v1394 = vpack.c.b16 %v1369, %v1368
      %v1395 = vpack.c.b16 %v1371, %v1370
      %v1396 = vpack.c.b16 %v1373, %v1372
      %v1397 = vpack.c.b16 %v1375, %v1374
      %v1398 = vpack.c.b16 %v1377, %v1376
      %v1399 = vpack.c.b16 %v1379, %v1378
      %v1400 = vpack.c.b16 %v1381, %v1380
      %v1401 = vpack.c.b16 %v1383, %v1382
      %v1402 = vpack.c.b16 %v1385, %v1384
      %v1403 = vpack.c.b16 %v1387, %v1386
      %1420 = vmatprep.subr.bf16.mxu0 0
      %1421 = vmatpush1.bf16.msra.mxu0 %v1395
      %1422 = vmatprep.subr.bf16.mxu0 0
      %1423 = vmatpush1.bf16.msra.mxu0 %v1394
      %1424 = vmatprep.subr.bf16.mxu0 0
      %1425 = vmatpush1.bf16.msra.mxu0 %v1393
      %1426 = vmatprep.subr.bf16.mxu0 0
      %1427 = vmatpush1.bf16.msra.mxu0 %v1392
      %1428 = vmatprep.subr.bf16.mxu0 0
      %1429 = vmatpush1.bf16.msra.mxu0 %v1391
      %1430 = vmatprep.subr.bf16.mxu0 0
      %1431 = vmatpush1.bf16.msra.mxu0 %v1390
      %1432 = vmatprep.subr.bf16.mxu0 0
      %1433 = vmatpush1.bf16.msra.mxu0 %v1389
      %1434 = vmatprep.subr.bf16.mxu0 0
      %1435 = vmatpush1.bf16.msra.mxu0 %v1388
      %1436 = vmatprep.subr.bf16.mxu0 0
      %1437 = vmatpush2.bf16.msra.mxu0 %v1403
      %1438 = vmatprep.subr.bf16.mxu0 0
      %1439 = vmatpush2.bf16.msra.mxu0 %v1402
      %1440 = vmatprep.subr.bf16.mxu0 0
      %1441 = vmatpush2.bf16.msra.mxu0 %v1401
      %1442 = vmatprep.subr.bf16.mxu0 0
      %1443 = vmatpush2.bf16.msra.mxu0 %v1400
      %1444 = vmatprep.subr.bf16.mxu0 0
      %1445 = vmatpush2.bf16.msra.mxu0 %v1399
      %1446 = vmatprep.subr.bf16.mxu0 0
      %1447 = vmatpush2.bf16.msra.mxu0 %v1398
      %1448 = vmatprep.subr.bf16.mxu0 0
      %1449 = vmatpush2.bf16.msra.mxu0 %v1397
      %1450 = vmatprep.subr.bf16.mxu0 0
      %1451 = vmatpush2.bf16.msra.mxu0 %v1396
      %1452 = vmatprep.mubr.bf16.mxu0 %v1290
      %1453 = vmatmul.mubr.bf16.gmra.mxu0 %v1289
      %v1454 = vpop.f32.mrf.mxu0
      %v1455 = vadd.f32 %v1323, %v1454
      %v1456 = vpop.f32.mrf.mxu0
      %v1457 = vpop.f32.mrf.mxu0
      %v1458 = vadd.f32 %v1323, %v1457
      %v1459 = vpop.f32.mrf.mxu0
      %1460 = vdwg.mxu0
      %1461 = vst [vmem:[%s229] sm:$0xff] %v1455
      %1462 = vst [vmem:[%s229 + $0x8] sm:$0xff] %v1458
      %s1463 = smul.u32 2, %s16
      %p1464 = scmp.lt.s32.totalorder %s1463, 3
      %s1465 = scalar_select %p1464, %s1463, 3
      %s1466 = smul.addr %s1465, 8
      %s1467 = scalar_lea.vmem %s5, %s1466
      // Predicated region
      $region41: #{fully_connected_layer.5} parent=39 // pred_check
        %p1468 = pneg %p144
      $region42: #{fully_connected_layer.5} parent=39 // pred_check_branch
        %1470 = sbr.rel (%p1468) target = $region44
      $region43: #{fully_connected_layer.5} parent=39 // pred_region
        %s1471 = smul.u32 2, %s16
      $region44: #{fully_connected_layer.5} parent=39 // pred_fallthru
        _
    $region40: #{fully_connected_layer.5} parent=5 // pred_fallthru
      _
    %p1472 = scmp.le.s32.totalorder 2, %s11
    // Predicated region
    $region45: #{fully_connected_layer.5} parent=5 // pred_check
      %p1473 = pneg %p1472
    $region46: #{fully_connected_layer.5} parent=5 // pred_check_branch
      %1475 = sbr.rel (%p1473) target = $region48
    $region47: #{fully_connected_layer.5} parent=5 // pred_region
      %s1476 = ssub.s32 %s11, 2
      // Predicated region
      $region49: #{fully_connected_layer.5} parent=47 // pred_check
        %p1477 = pneg %p150
      $region50: #{fully_connected_layer.5} parent=47 // pred_check_branch
        %1479 = sbr.rel (%p1477) target = $region52
      $region51: #{fully_connected_layer.5} parent=47 // pred_region
        %s1480 = smul.u32 2, %s17
        %p1481 = scmp.lt.s32.totalorder %s1480, 3
        %s1482 = scalar_select %p1481, %s1480, 3
        %s1483 = smul.addr %s1482, 8
        %s1484 = scalar_lea.vmem %s5, %s1483
      $region52: #{fully_connected_layer.5} parent=47 // pred_fallthru
        _
    $region48: #{fully_connected_layer.5} parent=5 // pred_fallthru
      _
  $region6: #{fully_connected_layer.5} parent=0 // loop_footer
    %s15 = sadd.s32 1, %s11
  $region7: #{fully_connected_layer.5} parent=0 // loop_footer_branch
    %10 = sbr.rel target = $region3
  $region8: #{fully_connected_layer.5} parent=0 // loop_exit
    _

</llo_original>
